<compile_context>
chip_gen: v7x
topology: tpu7x:2x2x1
jax: 0.10.0
libtpu: 0.0.40
codegen_flags: <defaults>
</compile_context>

<pallas_src>
import math

import jax
import jax.numpy as jnp
from jax import lax
from jax.experimental import pallas as pl
from jax.experimental.pallas import tpu as pltpu

_LANE = 128


def _round_up(v: int, m: int) -> int:
    return ((v + m - 1) // m) * m


# ----------------------------------------------------------------------------
# Glue: dense bicubic interpolation matrix (out_size, in_size), matching
# PyTorch's upsample_bicubic2d with align_corners=True.
# ----------------------------------------------------------------------------
def _bicubic_weight_matrix(in_size: int, out_size: int) -> jnp.ndarray:
    A = -0.75  # PyTorch's cubic coefficient

    if out_size > 1:
        scale = (in_size - 1) / (out_size - 1)  # align_corners=True mapping
    else:
        scale = 0.0

    out_idx = jnp.arange(out_size, dtype=jnp.float32)
    real = out_idx * jnp.float32(scale)
    i0 = jnp.floor(real)
    t = real - i0
    i0 = i0.astype(jnp.int32)

    def cubic1(x):  # |x| in [0, 1]
        return ((A + 2.0) * x - (A + 3.0)) * x * x + 1.0

    def cubic2(x):  # |x| in [1, 2]
        return ((A * x - 5.0 * A) * x + 8.0 * A) * x - 4.0 * A

    # coefficients for taps at i0-1, i0, i0+1, i0+2
    coeffs = jnp.stack(
        [cubic2(t + 1.0), cubic1(t), cubic1(1.0 - t), cubic2(2.0 - t)], axis=1
    )  # (out_size, 4)
    taps = i0[:, None] + jnp.arange(-1, 3, dtype=jnp.int32)[None, :]  # (out_size, 4)
    taps = jnp.clip(taps, 0, in_size - 1)  # border clamp

    W = jnp.zeros((out_size, in_size), jnp.float32)
    W = W.at[jnp.arange(out_size)[:, None], taps].add(coeffs)  # clamped taps accumulate
    return W


# ----------------------------------------------------------------------------
# Pallas kernel: B images per step. Two batched MXU matmuls, f32 accumulate.
# ----------------------------------------------------------------------------
def _upsample_kernel(wy_ref, x_ref, wxt_ref, o_ref):
    B, H, W = x_ref.shape
    H_out = wy_ref.shape[0]
    W_out = wxt_ref.shape[1]

    x = x_ref[...].astype(jnp.float32)                        # (B, H, W) in-kernel cast
    wy_b = jnp.broadcast_to(wy_ref[...], (B, H_out, H))       # resident weights, replicated
    wxt_b = jnp.broadcast_to(wxt_ref[...], (B, W, W_out))

    # row pass (batched over B): (H_out, H) @ (H, W) -> (B, H_out, W)
    t = lax.dot_general(
        wy_b, x,
        dimension_numbers=(((2,), (1,)), ((0,), (0,))),
        preferred_element_type=jnp.float32,
    )
    # column pass (batched over B): (H_out, W) @ (W, W_out) -> (B, H_out, W_out)
    out = lax.dot_general(
        t, wxt_b,
        dimension_numbers=(((2,), (1,)), ((0,), (0,))),
        preferred_element_type=jnp.float32,
    )
    o_ref[...] = out.astype(o_ref.dtype)


# ----------------------------------------------------------------------------
# B selection: lane/sublane-padded VMEM accounting, generation-aware budget.
# ----------------------------------------------------------------------------
def _pick_batch_block(nc, h, w, h_out, w_out, in_itemsize, vmem_budget, multi_tc):
    sub_in = max(1, 32 // in_itemsize)   # native sublane tile: 8 f32 / 16 bf16
    SUB_F32 = 8

    def padded(rows, cols, sub):  # padded element count of a 2-D (rows, cols) tile
        return _round_up(max(int(rows), 1), sub) * _round_up(max(int(cols), 1), _LANE)

    # Per-image VMEM footprint (bytes), Mosaic lane/sublane padding included.
    per_img = (
        2 * padded(h, w, sub_in) * in_itemsize            # input block (double-buffered)
        + 2 * padded(h_out, w_out, sub_in) * in_itemsize  # output block (double-buffered)
        + padded(h, w, SUB_F32) * 4                       # f32 cast of the input block
        + padded(h_out, h, SUB_F32) * 4                   # broadcast Wy   (B, H_out, H)
        + padded(w, w_out, SUB_F32) * 4                   # broadcast Wx^T (B, W, W_out)
        + padded(h_out, w, SUB_F32) * 4                   # row-pass intermediate (f32)
        + padded(h_out, w_out, SUB_F32) * 4               # column-pass result before cast
    )
    fixed = (
        2 * (padded(h_out, h, SUB_F32) + padded(w, w_out, SUB_F32)) * 4  # resident weights
        + (1 << 20)                                       # compiler-internal scratch slack
    )

    cap = max(1, (vmem_budget - fixed) // per_img)
    cap = min(cap, 1024)            # keep the in-kernel weight broadcast bounded
    if multi_tc and nc >= 2:
        cap = min(cap, nc // 2)     # >=2 grid steps so both TensorCores get work (v7x)
    cap = max(1, min(cap, nc))

    # Prefer a divisor of nc close to the cap (no padding); otherwise pad NC up.
    for d in range(cap, cap // 2, -1):
        if nc % d == 0:
            return d
    return cap


# ----------------------------------------------------------------------------
# Wrapper
# ----------------------------------------------------------------------------
def upsample_bicubic(x: jnp.ndarray, scale: float) -> jnp.ndarray:
    """Bicubic upsample, align_corners=True, NCHW in / NCHW out."""
    N, C, H, W = x.shape
    H_out = int(math.floor(H * scale))
    W_out = int(math.floor(W * scale))
    NC = N * C

    # f32 weights and f32 accumulation for all input dtypes (matches PyTorch,
    # which computes interpolation weights in float even for low-precision inputs).
    wy = _bicubic_weight_matrix(H, H_out)        # (H_out, H), f32
    wxt = _bicubic_weight_matrix(W, W_out).T     # (W, W_out), f32

    itemsize = jnp.dtype(x.dtype).itemsize

    # Generation-aware VMEM limits (v5e/v6e: 128 MiB; v7x: 64 MiB per TensorCore).
    try:
        vmem_phys = int(pltpu.get_tpu_info().vmem_capacity_bytes)
    except Exception:
        vmem_phys = 128 * 1024 * 1024
    multi_tc = vmem_phys <= 80 * 1024 * 1024     # 64 MiB/TC => v7x-class (2 TCs/chip)
    vmem_limit = min(int(vmem_phys * 0.75), 100 * 1024 * 1024)
    block_budget = int(vmem_limit * 0.8)         # headroom for double-buffering slop

    B = _pick_batch_block(NC, H, W, H_out, W_out, itemsize, block_budget, multi_tc)
    steps = -(-NC // B)
    NC_pad = steps * B

    x2 = x.reshape(NC, H, W)                     # keep native dtype through HBM
    if NC_pad != NC:
        x2 = jnp.pad(x2, ((0, NC_pad - NC), (0, 0), (0, 0)))

    cost = pl.CostEstimate(
        flops=2 * NC_pad * (H_out * H * W + H_out * W * W_out),
        transcendentals=0,
        bytes_accessed=NC_pad * (H * W + H_out * W_out) * itemsize
        + (H_out * H + W * W_out) * 4,
    )

    out = pl.pallas_call(
        _upsample_kernel,
        out_shape=jax.ShapeDtypeStruct((NC_pad, H_out, W_out), x.dtype),
        grid_spec=pltpu.PrefetchScalarGridSpec(
            num_scalar_prefetch=0,
            grid=(steps,),
            in_specs=[
                pl.BlockSpec((H_out, H), lambda i: (0, 0)),    # Wy (shared, resident)
                pl.BlockSpec((B, H, W), lambda i: (i, 0, 0)),  # B images per step
                pl.BlockSpec((W, W_out), lambda i: (0, 0)),    # Wx^T (shared, resident)
            ],
            out_specs=pl.BlockSpec((B, H_out, W_out), lambda i: (i, 0, 0)),
        ),
        compiler_params=pltpu.CompilerParams(
            dimension_semantics=("parallel",),
            vmem_limit_bytes=vmem_limit,
        ),
        cost_estimate=cost,
    )(wy, x2, wxt)

    if NC_pad != NC:
        out = out[:NC]
    return out.reshape(N, C, H_out, W_out)


if __name__ == "__main__":
    key = jax.random.PRNGKey(0)
    x = jax.random.normal(key, (2, 4, 16, 16), dtype=jnp.float32)
    scale = 2  # Upsample(scale=2)

    y = upsample_bicubic(x, scale)
    y = jax.block_until_ready(y)
    assert y.shape == (2, 4, 32, 32), y.shape
    assert y.dtype == x.dtype, y.dtype

    # consistency check vs. plain-JAX evaluation of the same factorization
    wy = _bicubic_weight_matrix(16, 32)
    wx = _bicubic_weight_matrix(16, 32)
    ref = jnp.einsum("oh,nchw,pw->ncop", wy, x, wx)
    assert jnp.max(jnp.abs(y - ref)) < 1e-4

    # bf16 path: native dtype through HBM, f32 weights/accumulation in-kernel
    xb = x.astype(jnp.bfloat16)
    yb = jax.block_until_ready(upsample_bicubic(xb, scale))
    assert yb.dtype == jnp.bfloat16, yb.dtype
    assert jnp.max(jnp.abs(yb.astype(jnp.float32) - ref)) < 1e-1

    print("KERNEL_OK")
</pallas_src>

<mosaic_0001>
module attributes {stable_mosaic.version = 11 : i64} {
  func.func @_upsample_kernel(%arg0: i32, %arg1: memref<32x16xf32, #tpu.memory_space<vmem>>, %arg2: memref<8x16x16xf32, #tpu.memory_space<vmem>>, %arg3: memref<16x32xf32, #tpu.memory_space<vmem>>, %arg4: memref<8x32x32xf32, #tpu.memory_space<vmem>>) attributes {dimension_semantics = [#tpu.dimension_semantics<parallel>], iteration_bounds = array<i64: 1>, scalar_prefetch = 0 : i64, scratch_operands = 0 : i64, tpu.core_type = #tpu.core_type<tc>, window_params = [{pipeline_mode = #tpu.pipeline_mode<synchronous>, transform_indices = @transform_0, window_bounds = array<i64: 32, 16>}, {transform_indices = @transform_1, window_bounds = array<i64: 8, 16, 16>}, {pipeline_mode = #tpu.pipeline_mode<synchronous>, transform_indices = @transform_2, window_bounds = array<i64: 16, 32>}, {transform_indices = @transform_3, window_bounds = array<i64: 8, 32, 32>}]} {
    %c0 = arith.constant 0 : index
    %c0_0 = arith.constant 0 : index
    %c0_1 = arith.constant 0 : index
    %0 = vector.load %arg2[%c0, %c0_0, %c0_1] : memref<8x16x16xf32, #tpu.memory_space<vmem>>, vector<8x16x16xf32>
    %c0_2 = arith.constant 0 : index
    %c0_3 = arith.constant 0 : index
    %1 = vector.load %arg1[%c0_2, %c0_3] : memref<32x16xf32, #tpu.memory_space<vmem>>, vector<32x16xf32>
    %2 = vector.shape_cast %1 : vector<32x16xf32> to vector<1x32x16xf32>
    %3 = vector.broadcast %2 : vector<1x32x16xf32> to vector<8x32x16xf32>
    %c0_4 = arith.constant 0 : index
    %c0_5 = arith.constant 0 : index
    %4 = vector.load %arg3[%c0_4, %c0_5] : memref<16x32xf32, #tpu.memory_space<vmem>>, vector<16x32xf32>
    %5 = vector.shape_cast %4 : vector<16x32xf32> to vector<1x16x32xf32>
    %6 = vector.broadcast %5 : vector<1x16x32xf32> to vector<8x16x32xf32>
    %cst = arith.constant dense<0.000000e+00> : vector<8x32x16xf32>
    %7 = tpu.matmul %3, %0, %cst {dimension_numbers = #tpu.dot_dimension_numbers<[2], [1], [1], [2], [0, 0, 0, 1, 1, 2], [0], [0]>} : vector<8x32x16xf32>, vector<8x16x16xf32>, vector<8x32x16xf32> -> vector<8x32x16xf32>
    %cst_6 = arith.constant dense<0.000000e+00> : vector<8x32x32xf32>
    %8 = tpu.matmul %7, %6, %cst_6 {dimension_numbers = #tpu.dot_dimension_numbers<[2], [1], [1], [2], [0, 0, 0, 1, 1, 2], [0], [0]>} : vector<8x32x16xf32>, vector<8x16x32xf32>, vector<8x32x32xf32> -> vector<8x32x32xf32>
    %c0_7 = arith.constant 0 : index
    %c0_8 = arith.constant 0 : index
    %c0_9 = arith.constant 0 : index
    %9 = vector.load %arg4[%c0_7, %c0_8, %c0_9] : memref<8x32x32xf32, #tpu.memory_space<vmem>>, vector<8x32x32xf32>
    tpu.vector_store %arg4[%c0_7, %c0_8, %c0_9], %8 {strides = array<i32>} : memref<8x32x32xf32, #tpu.memory_space<vmem>>, vector<8x32x32xf32>,
    return
  }
  func.func @transform_0(%arg0: i32) -> (i32, i32) {
    %c0_i32 = arith.constant 0 : i32
    %c0_i32_0 = arith.constant 0 : i32
    %c0_i32_1 = arith.constant 0 : i32
    return %c0_i32, %c0_i32_0 : i32, i32
  }
  func.func @transform_1(%arg0: i32) -> (i32, i32, i32) {
    %c0_i32 = arith.constant 0 : i32
    %c0_i32_0 = arith.constant 0 : i32
    %c0_i32_1 = arith.constant 0 : i32
    return %arg0, %c0_i32, %c0_i32_0 : i32, i32, i32
  }
  func.func @transform_2(%arg0: i32) -> (i32, i32) {
    %c0_i32 = arith.constant 0 : i32
    %c0_i32_0 = arith.constant 0 : i32
    %c0_i32_1 = arith.constant 0 : i32
    return %c0_i32, %c0_i32_0 : i32, i32
  }
  func.func @transform_3(%arg0: i32) -> (i32, i32, i32) {
    %c0_i32 = arith.constant 0 : i32
    %c0_i32_0 = arith.constant 0 : i32
    %c0_i32_1 = arith.constant 0 : i32
    return %arg0, %c0_i32, %c0_i32_0 : i32, i32, i32
  }
}

</mosaic_0001>

<llo_original>
// kernel: tpu_custom_call.1
$region0: #{tpu_custom_call.1}
  #allocation0 [shape = 'u32[]', space=smem, size = 0x4, offset = 0x4, fixed_abs, tag = 'smem constant byte address 0x4 - core index']
  #allocation1 [shape = 'u32[144,128]{1,0:T(1,128)}', space=vmem, size = 0x12000, scoped, tag = 'internal scratch']
  %s0 = inlined_call_operand.hbm [shape: f32[32,16], index: 0, kind: input, shape index: {}]
  %s1 = inlined_call_operand.hbm [shape: f32[8,16,16], index: 1, kind: input, shape index: {}]
  %s2 = inlined_call_operand.hbm [shape: f32[16,32], index: 2, kind: input, shape index: {}]
  %s3 = inlined_call_operand.hbm [shape: f32[8,32,32], index: 3, kind: output, shape index: {}]
  %s4 = sld [smem:[#allocation0]]
  $region34: #{tpu_custom_call.1} parent=0
    _
  %s6 = ssub.s32 1, %s4
  %s7 = scalar_select 0, %s6, %s4
  $region1: #{tpu_custom_call.1} parent=0
    #allocation2 [shape = 'u8[16384]{0}', space=vmem, size = 0x4000, scoped, tag = 'input window, operand 0, single buffered']
    #allocation3 [shape = 's32[1]{0}', space=sflag, size = 0x4, scoped, tag = 'scoped memory for tpu_custom_call.1']
    #allocation4 [shape = 's32[1]{0}', space=sflag, size = 0x4, scoped, tag = 'scoped memory for tpu_custom_call.1']
    #allocation5 [shape = 'u8[65536]{0}', space=vmem, size = 0x10000, scoped, tag = 'input window, operand 1, single buffered']
    #allocation6 [shape = 's32[1]{0}', space=sflag, size = 0x4, scoped, tag = 'scoped memory for tpu_custom_call.1']
    #allocation7 [shape = 'u8[8192]{0}', space=vmem, size = 0x2000, scoped, tag = 'input window, operand 2, single buffered']
    #allocation8 [shape = 'u8[131072]{0}', space=vmem, size = 0x20000, scoped, tag = 'output window, operand 0, single buffered']
    %8 = vsyncpa [#allocation3], 0
    %9 = vsyncpa [#allocation6], 0
    %10 = vsyncpa [#allocation4], 0
    // Predicated region
    $region2: #{tpu_custom_call.1} parent=1 // pred_check
      _
    $region3: #{tpu_custom_call.1} parent=1 // pred_check_branch
      %12 = sbr.rel (0) target = $region5
    $region4: #{tpu_custom_call.1} parent=1 // pred_region
      %s14 = ssub.s32 512, 512
      %15 = vsyncadd [#allocation3], %s14
      %s16 = sshll.u32 [#allocation2], 4
      %s17 = int_to_ptr.vmem [resolvable:$true] %s16
      %22 = dma.hbm_to_vmem [thread:$0]  %s0, 512, %s17, [#allocation3], 128, 128, 8
    $region5: #{tpu_custom_call.1} parent=1 // pred_fallthru
      _
    // Predicated region
    $region6: #{tpu_custom_call.1} parent=1 // pred_check
      _
    $region7: #{tpu_custom_call.1} parent=1 // pred_check_branch
      %24 = sbr.rel (0) target = $region9
    $region8: #{tpu_custom_call.1} parent=1 // pred_region
      %s26 = ssub.s32 2048, 2048
      %27 = vsyncadd [#allocation6], %s26
      %s28 = sshll.u32 [#allocation5], 4
      %s29 = int_to_ptr.vmem [resolvable:$true] %s28
      %34 = dma.hbm_to_vmem [thread:$0]  %s1, 2048, %s29, [#allocation6], 128, 128, 8
    $region9: #{tpu_custom_call.1} parent=1 // pred_fallthru
      _
    // Predicated region
    $region10: #{tpu_custom_call.1} parent=1 // pred_check
      _
    $region11: #{tpu_custom_call.1} parent=1 // pred_check_branch
      %36 = sbr.rel (0) target = $region13
    $region12: #{tpu_custom_call.1} parent=1 // pred_region
      %s38 = ssub.s32 256, 256
      %39 = vsyncadd [#allocation6], %s38
      %s40 = sshll.u32 [#allocation7], 4
      %s41 = int_to_ptr.vmem [resolvable:$true] %s40
      %46 = dma.hbm_to_vmem [thread:$0]  %s2, 256, %s41, [#allocation6], 128, 128, 8
    $region13: #{tpu_custom_call.1} parent=1 // pred_fallthru
      _
    // Predicated region
    $region14: #{tpu_custom_call.1} parent=1 // pred_check
      _
    $region15: #{tpu_custom_call.1} parent=1 // pred_check_branch
      %48 = sbr.rel (0) target = $region17
    $region16: #{tpu_custom_call.1} parent=1 // pred_region
      %49 = dma.done [#allocation3], 512
    $region17: #{tpu_custom_call.1} parent=1 // pred_fallthru
      _
    // Predicated region
    $region18: #{tpu_custom_call.1} parent=1 // pred_check
      _
    $region19: #{tpu_custom_call.1} parent=1 // pred_check_branch
      %51 = sbr.rel (0) target = $region21
    $region20: #{tpu_custom_call.1} parent=1 // pred_region
      %52 = dma.done [#allocation6], 2048
    $region21: #{tpu_custom_call.1} parent=1 // pred_fallthru
      _
    // Predicated region
    $region22: #{tpu_custom_call.1} parent=1 // pred_check
      _
    $region23: #{tpu_custom_call.1} parent=1 // pred_check_branch
      %54 = sbr.rel (0) target = $region25
    $region24: #{tpu_custom_call.1} parent=1 // pred_region
      %55 = dma.done [#allocation6], 256
    $region25: #{tpu_custom_call.1} parent=1 // pred_fallthru
      _
    %v56 = vld [vmem:[#allocation5] sm:$0xff]
    %v57 = vld [vmem:[#allocation5 + $0x8] sm:$0xff]
    %v58 = vld [vmem:[#allocation5 + $0x10] sm:$0xff]
    %v59 = vld [vmem:[#allocation5 + $0x18] sm:$0xff]
    %v60 = vld [vmem:[#allocation5 + $0x20] sm:$0xff]
    %v61 = vld [vmem:[#allocation5 + $0x28] sm:$0xff]
    %v62 = vld [vmem:[#allocation5 + $0x30] sm:$0xff]
    %v63 = vld [vmem:[#allocation5 + $0x38] sm:$0xff]
    %v64 = vld [vmem:[#allocation5 + $0x40] sm:$0xff]
    %v65 = vld [vmem:[#allocation5 + $0x48] sm:$0xff]
    %v66 = vld [vmem:[#allocation5 + $0x50] sm:$0xff]
    %v67 = vld [vmem:[#allocation5 + $0x58] sm:$0xff]
    %v68 = vld [vmem:[#allocation5 + $0x60] sm:$0xff]
    %v69 = vld [vmem:[#allocation5 + $0x68] sm:$0xff]
    %v70 = vld [vmem:[#allocation5 + $0x70] sm:$0xff]
    %v71 = vld [vmem:[#allocation5 + $0x78] sm:$0xff]
    %v72 = vld [vmem:[#allocation2] sm:$0xff]
    %v73 = vld [vmem:[#allocation2 + $0x8] sm:$0xff]
    %v74 = vld [vmem:[#allocation2 + $0x10] sm:$0xff]
    %v75 = vld [vmem:[#allocation2 + $0x18] sm:$0xff]
    %v76 = vld [vmem:[#allocation7] sm:$0xff]
    %v77 = vld [vmem:[#allocation7 + $0x8] sm:$0xff]
    %vm78 = vcmask 130048
    %v80 = vsel %vm78, %v72, 0
    %v83 = vsel %vm78, %v73, 0
    %v86 = vsel %vm78, %v74, 0
    %v89 = vsel %vm78, %v75, 0
    %91 = vmatprep.subr.mxu0 0.0
    %92 = vmatpush1.msra.mxu0 %v56
    %93 = vmatprep.subr.mxu0 0.0
    %94 = vmatpush1.msra.mxu0 %v57
    %95 = vmatprep.subr.mxu0 0.0
    %96 = vmatpush1.msra.mxu0 0.0
    %97 = vmatprep.subr.mxu0 0.0
    %98 = vmatpush1.msra.mxu0 0.0
    %99 = vmatprep.subr.mxu0 0.0
    %100 = vmatpush1.msra.mxu0 0.0
    %101 = vmatprep.subr.mxu0 0.0
    %102 = vmatpush1.msra.mxu0 0.0
    %103 = vmatprep.subr.mxu0 0.0
    %104 = vmatpush1.msra.mxu0 0.0
    %105 = vmatprep.subr.mxu0 0.0
    %106 = vmatpush1.msra.mxu0 0.0
    %107 = vmatprep.subr.mxu0 0.0
    %108 = vmatpush1.msra.mxu0 0.0
    %109 = vmatprep.subr.mxu0 0.0
    %110 = vmatpush1.msra.mxu0 0.0
    %111 = vmatprep.subr.mxu0 0.0
    %112 = vmatpush1.msra.mxu0 0.0
    %113 = vmatprep.subr.mxu0 0.0
    %114 = vmatpush1.msra.mxu0 0.0
    %115 = vmatprep.subr.mxu0 0.0
    %116 = vmatpush1.msra.mxu0 0.0
    %117 = vmatprep.subr.mxu0 0.0
    %118 = vmatpush1.msra.mxu0 0.0
    %119 = vmatprep.subr.mxu0 0.0
    %120 = vmatpush1.msra.mxu0 0.0
    %121 = vmatprep.subr.mxu0 0.0
    %122 = vmatpush1.msra.mxu0 0.0
    %123 = vmatprep.subr.mxu0 0.0
    %124 = vmatpush1.msra.mxu0 0.0
    %125 = vmatprep.subr.mxu0 0.0
    %126 = vmatpush1.msra.mxu0 0.0
    %127 = vmatprep.subr.mxu0 0.0
    %128 = vmatpush1.msra.mxu0 0.0
    %129 = vmatprep.subr.mxu0 0.0
    %130 = vmatpush1.msra.mxu0 0.0
    %131 = vmatprep.subr.mxu0 0.0
    %132 = vmatpush1.msra.mxu0 0.0
    %133 = vmatprep.subr.mxu0 0.0
    %134 = vmatpush1.msra.mxu0 0.0
    %135 = vmatprep.subr.mxu0 0.0
    %136 = vmatpush1.msra.mxu0 0.0
    %137 = vmatprep.subr.mxu0 0.0
    %138 = vmatpush1.msra.mxu0 0.0
    %139 = vmatprep.subr.mxu0 0.0
    %140 = vmatpush1.msra.mxu0 0.0
    %141 = vmatprep.subr.mxu0 0.0
    %142 = vmatpush1.msra.mxu0 0.0
    %143 = vmatprep.subr.mxu0 0.0
    %144 = vmatpush1.msra.mxu0 0.0
    %145 = vmatprep.subr.mxu0 0.0
    %146 = vmatpush1.msra.mxu0 0.0
    %147 = vmatprep.subr.mxu0 0.0
    %148 = vmatpush1.msra.mxu0 0.0
    %149 = vmatprep.subr.mxu0 0.0
    %150 = vmatpush1.msra.mxu0 0.0
    %151 = vmatprep.subr.mxu0 0.0
    %152 = vmatpush1.msra.mxu0 0.0
    %153 = vmatprep.subr.mxu0 0.0
    %154 = vmatpush1.msra.mxu0 0.0
    %155 = vmatprep.mubr.f32.mxu0 0.0
    %156 = vmatmul.mubr.f32.gmra.mrb[0].mxu0 %v80
    %v157 = vpop.f32.mrb[0].mxu0
    %v158 = vadd.f32 0.0, %v157
    %v159 = vpop.f32.mrb[0].mxu0
    %160 = vmatprep.mubr.f32.mxu0 0.0
    %161 = vmatmul.mubr.f32.gmra.mrb[0].mxu0 %v83
    %v162 = vpop.f32.mrb[0].mxu0
    %v163 = vadd.f32 0.0, %v162
    %v164 = vpop.f32.mrb[0].mxu0
    %165 = vmatprep.mubr.f32.mxu0 0.0
    %166 = vmatmul.mubr.f32.gmra.mrb[0].mxu0 %v86
    %v167 = vpop.f32.mrb[0].mxu0
    %v168 = vadd.f32 0.0, %v167
    %v169 = vpop.f32.mrb[0].mxu0
    %170 = vmatprep.mubr.f32.mxu0 0.0
    %171 = vmatmul.mubr.f32.gmra.mrb[0].mxu0 %v89
    %v172 = vpop.f32.mrb[0].mxu0
    %v173 = vadd.f32 0.0, %v172
    %v174 = vpop.f32.mrb[0].mxu0
    %175 = vdwg.mxu0
    %176 = vmatprep.subr.mxu0 0.0
    %177 = vmatpush1.msra.mxu0 %v58
    %178 = vmatprep.subr.mxu0 0.0
    %179 = vmatpush1.msra.mxu0 %v59
    %180 = vmatprep.subr.mxu0 0.0
    %181 = vmatpush1.msra.mxu0 0.0
    %182 = vmatprep.subr.mxu0 0.0
    %183 = vmatpush1.msra.mxu0 0.0
    %184 = vmatprep.subr.mxu0 0.0
    %185 = vmatpush1.msra.mxu0 0.0
    %186 = vmatprep.subr.mxu0 0.0
    %187 = vmatpush1.msra.mxu0 0.0
    %188 = vmatprep.subr.mxu0 0.0
    %189 = vmatpush1.msra.mxu0 0.0
    %190 = vmatprep.subr.mxu0 0.0
    %191 = vmatpush1.msra.mxu0 0.0
    %192 = vmatprep.subr.mxu0 0.0
    %193 = vmatpush1.msra.mxu0 0.0
    %194 = vmatprep.subr.mxu0 0.0
    %195 = vmatpush1.msra.mxu0 0.0
    %196 = vmatprep.subr.mxu0 0.0
    %197 = vmatpush1.msra.mxu0 0.0
    %198 = vmatprep.subr.mxu0 0.0
    %199 = vmatpush1.msra.mxu0 0.0
    %200 = vmatprep.subr.mxu0 0.0
    %201 = vmatpush1.msra.mxu0 0.0
    %202 = vmatprep.subr.mxu0 0.0
    %203 = vmatpush1.msra.mxu0 0.0
    %204 = vmatprep.subr.mxu0 0.0
    %205 = vmatpush1.msra.mxu0 0.0
    %206 = vmatprep.subr.mxu0 0.0
    %207 = vmatpush1.msra.mxu0 0.0
    %208 = vmatprep.subr.mxu0 0.0
    %209 = vmatpush1.msra.mxu0 0.0
    %210 = vmatprep.subr.mxu0 0.0
    %211 = vmatpush1.msra.mxu0 0.0
    %212 = vmatprep.subr.mxu0 0.0
    %213 = vmatpush1.msra.mxu0 0.0
    %214 = vmatprep.subr.mxu0 0.0
    %215 = vmatpush1.msra.mxu0 0.0
    %216 = vmatprep.subr.mxu0 0.0
    %217 = vmatpush1.msra.mxu0 0.0
    %218 = vmatprep.subr.mxu0 0.0
    %219 = vmatpush1.msra.mxu0 0.0
    %220 = vmatprep.subr.mxu0 0.0
    %221 = vmatpush1.msra.mxu0 0.0
    %222 = vmatprep.subr.mxu0 0.0
    %223 = vmatpush1.msra.mxu0 0.0
    %224 = vmatprep.subr.mxu0 0.0
    %225 = vmatpush1.msra.mxu0 0.0
    %226 = vmatprep.subr.mxu0 0.0
    %227 = vmatpush1.msra.mxu0 0.0
    %228 = vmatprep.subr.mxu0 0.0
    %229 = vmatpush1.msra.mxu0 0.0
    %230 = vmatprep.subr.mxu0 0.0
    %231 = vmatpush1.msra.mxu0 0.0
    %232 = vmatprep.subr.mxu0 0.0
    %233 = vmatpush1.msra.mxu0 0.0
    %234 = vmatprep.subr.mxu0 0.0
    %235 = vmatpush1.msra.mxu0 0.0
    %236 = vmatprep.subr.mxu0 0.0
    %237 = vmatpush1.msra.mxu0 0.0
    %238 = vmatprep.subr.mxu0 0.0
    %239 = vmatpush1.msra.mxu0 0.0
    %240 = vmatprep.mubr.f32.mxu0 0.0
    %241 = vmatmul.mubr.f32.gmra.mrb[0].mxu0 %v80
    %v242 = vpop.f32.mrb[0].mxu0
    %v243 = vadd.f32 0.0, %v242
    %v244 = vpop.f32.mrb[0].mxu0
    %245 = vmatprep.mubr.f32.mxu0 0.0
    %246 = vmatmul.mubr.f32.gmra.mrb[0].mxu0 %v83
    %v247 = vpop.f32.mrb[0].mxu0
    %v248 = vadd.f32 0.0, %v247
    %v249 = vpop.f32.mrb[0].mxu0
    %250 = vmatprep.mubr.f32.mxu0 0.0
    %251 = vmatmul.mubr.f32.gmra.mrb[0].mxu0 %v86
    %v252 = vpop.f32.mrb[0].mxu0
    %v253 = vadd.f32 0.0, %v252
    %v254 = vpop.f32.mrb[0].mxu0
    %255 = vmatprep.mubr.f32.mxu0 0.0
    %256 = vmatmul.mubr.f32.gmra.mrb[0].mxu0 %v89
    %v257 = vpop.f32.mrb[0].mxu0
    %v258 = vadd.f32 0.0, %v257
    %v259 = vpop.f32.mrb[0].mxu0
    %260 = vdwg.mxu0
    %261 = vmatprep.subr.mxu0 0.0
    %262 = vmatpush1.msra.mxu0 %v60
    %263 = vmatprep.subr.mxu0 0.0
    %264 = vmatpush1.msra.mxu0 %v61
    %265 = vmatprep.subr.mxu0 0.0
    %266 = vmatpush1.msra.mxu0 0.0
    %267 = vmatprep.subr.mxu0 0.0
    %268 = vmatpush1.msra.mxu0 0.0
    %269 = vmatprep.subr.mxu0 0.0
    %270 = vmatpush1.msra.mxu0 0.0
    %271 = vmatprep.subr.mxu0 0.0
    %272 = vmatpush1.msra.mxu0 0.0
    %273 = vmatprep.subr.mxu0 0.0
    %274 = vmatpush1.msra.mxu0 0.0
    %275 = vmatprep.subr.mxu0 0.0
    %276 = vmatpush1.msra.mxu0 0.0
    %277 = vmatprep.subr.mxu0 0.0
    %278 = vmatpush1.msra.mxu0 0.0
    %279 = vmatprep.subr.mxu0 0.0
    %280 = vmatpush1.msra.mxu0 0.0
    %281 = vmatprep.subr.mxu0 0.0
    %282 = vmatpush1.msra.mxu0 0.0
    %283 = vmatprep.subr.mxu0 0.0
    %284 = vmatpush1.msra.mxu0 0.0
    %285 = vmatprep.subr.mxu0 0.0
    %286 = vmatpush1.msra.mxu0 0.0
    %287 = vmatprep.subr.mxu0 0.0
    %288 = vmatpush1.msra.mxu0 0.0
    %289 = vmatprep.subr.mxu0 0.0
    %290 = vmatpush1.msra.mxu0 0.0
    %291 = vmatprep.subr.mxu0 0.0
    %292 = vmatpush1.msra.mxu0 0.0
    %293 = vmatprep.subr.mxu0 0.0
    %294 = vmatpush1.msra.mxu0 0.0
    %295 = vmatprep.subr.mxu0 0.0
    %296 = vmatpush1.msra.mxu0 0.0
    %297 = vmatprep.subr.mxu0 0.0
    %298 = vmatpush1.msra.mxu0 0.0
    %299 = vmatprep.subr.mxu0 0.0
    %300 = vmatpush1.msra.mxu0 0.0
    %301 = vmatprep.subr.mxu0 0.0
    %302 = vmatpush1.msra.mxu0 0.0
    %303 = vmatprep.subr.mxu0 0.0
    %304 = vmatpush1.msra.mxu0 0.0
    %305 = vmatprep.subr.mxu0 0.0
    %306 = vmatpush1.msra.mxu0 0.0
    %307 = vmatprep.subr.mxu0 0.0
    %308 = vmatpush1.msra.mxu0 0.0
    %309 = vmatprep.subr.mxu0 0.0
    %310 = vmatpush1.msra.mxu0 0.0
    %311 = vmatprep.subr.mxu0 0.0
    %312 = vmatpush1.msra.mxu0 0.0
    %313 = vmatprep.subr.mxu0 0.0
    %314 = vmatpush1.msra.mxu0 0.0
    %315 = vmatprep.subr.mxu0 0.0
    %316 = vmatpush1.msra.mxu0 0.0
    %317 = vmatprep.subr.mxu0 0.0
    %318 = vmatpush1.msra.mxu0 0.0
    %319 = vmatprep.subr.mxu0 0.0
    %320 = vmatpush1.msra.mxu0 0.0
    %321 = vmatprep.subr.mxu0 0.0
    %322 = vmatpush1.msra.mxu0 0.0
    %323 = vmatprep.subr.mxu0 0.0
    %324 = vmatpush1.msra.mxu0 0.0
    %325 = vmatprep.mubr.f32.mxu0 0.0
    %326 = vmatmul.mubr.f32.gmra.mrb[0].mxu0 %v80
    %v327 = vpop.f32.mrb[0].mxu0
    %v328 = vadd.f32 0.0, %v327
    %v329 = vpop.f32.mrb[0].mxu0
    %330 = vmatprep.mubr.f32.mxu0 0.0
    %331 = vmatmul.mubr.f32.gmra.mrb[0].mxu0 %v83
    %v332 = vpop.f32.mrb[0].mxu0
    %v333 = vadd.f32 0.0, %v332
    %v334 = vpop.f32.mrb[0].mxu0
    %335 = vmatprep.mubr.f32.mxu0 0.0
    %336 = vmatmul.mubr.f32.gmra.mrb[0].mxu0 %v86
    %v337 = vpop.f32.mrb[0].mxu0
    %v338 = vadd.f32 0.0, %v337
    %v339 = vpop.f32.mrb[0].mxu0
    %340 = vmatprep.mubr.f32.mxu0 0.0
    %341 = vmatmul.mubr.f32.gmra.mrb[0].mxu0 %v89
    %v342 = vpop.f32.mrb[0].mxu0
    %v343 = vadd.f32 0.0, %v342
    %v344 = vpop.f32.mrb[0].mxu0
    %345 = vdwg.mxu0
    %346 = vmatprep.subr.mxu0 0.0
    %347 = vmatpush1.msra.mxu0 %v62
    %348 = vmatprep.subr.mxu0 0.0
    %349 = vmatpush1.msra.mxu0 %v63
    %350 = vmatprep.subr.mxu0 0.0
    %351 = vmatpush1.msra.mxu0 0.0
    %352 = vmatprep.subr.mxu0 0.0
    %353 = vmatpush1.msra.mxu0 0.0
    %354 = vmatprep.subr.mxu0 0.0
    %355 = vmatpush1.msra.mxu0 0.0
    %356 = vmatprep.subr.mxu0 0.0
    %357 = vmatpush1.msra.mxu0 0.0
    %358 = vmatprep.subr.mxu0 0.0
    %359 = vmatpush1.msra.mxu0 0.0
    %360 = vmatprep.subr.mxu0 0.0
    %361 = vmatpush1.msra.mxu0 0.0
    %362 = vmatprep.subr.mxu0 0.0
    %363 = vmatpush1.msra.mxu0 0.0
    %364 = vmatprep.subr.mxu0 0.0
    %365 = vmatpush1.msra.mxu0 0.0
    %366 = vmatprep.subr.mxu0 0.0
    %367 = vmatpush1.msra.mxu0 0.0
    %368 = vmatprep.subr.mxu0 0.0
    %369 = vmatpush1.msra.mxu0 0.0
    %370 = vmatprep.subr.mxu0 0.0
    %371 = vmatpush1.msra.mxu0 0.0
    %372 = vmatprep.subr.mxu0 0.0
    %373 = vmatpush1.msra.mxu0 0.0
    %374 = vmatprep.subr.mxu0 0.0
    %375 = vmatpush1.msra.mxu0 0.0
    %376 = vmatprep.subr.mxu0 0.0
    %377 = vmatpush1.msra.mxu0 0.0
    %378 = vmatprep.subr.mxu0 0.0
    %379 = vmatpush1.msra.mxu0 0.0
    %380 = vmatprep.subr.mxu0 0.0
    %381 = vmatpush1.msra.mxu0 0.0
    %382 = vmatprep.subr.mxu0 0.0
    %383 = vmatpush1.msra.mxu0 0.0
    %384 = vmatprep.subr.mxu0 0.0
    %385 = vmatpush1.msra.mxu0 0.0
    %386 = vmatprep.subr.mxu0 0.0
    %387 = vmatpush1.msra.mxu0 0.0
    %388 = vmatprep.subr.mxu0 0.0
    %389 = vmatpush1.msra.mxu0 0.0
    %390 = vmatprep.subr.mxu0 0.0
    %391 = vmatpush1.msra.mxu0 0.0
    %392 = vmatprep.subr.mxu0 0.0
    %393 = vmatpush1.msra.mxu0 0.0
    %394 = vmatprep.subr.mxu0 0.0
    %395 = vmatpush1.msra.mxu0 0.0
    %396 = vmatprep.subr.mxu0 0.0
    %397 = vmatpush1.msra.mxu0 0.0
    %398 = vmatprep.subr.mxu0 0.0
    %399 = vmatpush1.msra.mxu0 0.0
    %400 = vmatprep.subr.mxu0 0.0
    %401 = vmatpush1.msra.mxu0 0.0
    %402 = vmatprep.subr.mxu0 0.0
    %403 = vmatpush1.msra.mxu0 0.0
    %404 = vmatprep.subr.mxu0 0.0
    %405 = vmatpush1.msra.mxu0 0.0
    %406 = vmatprep.subr.mxu0 0.0
    %407 = vmatpush1.msra.mxu0 0.0
    %408 = vmatprep.subr.mxu0 0.0
    %409 = vmatpush1.msra.mxu0 0.0
    %410 = vmatprep.mubr.f32.mxu0 0.0
    %411 = vmatmul.mubr.f32.gmra.mrb[0].mxu0 %v80
    %v412 = vpop.f32.mrb[0].mxu0
    %v413 = vadd.f32 0.0, %v412
    %v414 = vpop.f32.mrb[0].mxu0
    %415 = vmatprep.mubr.f32.mxu0 0.0
    %416 = vmatmul.mubr.f32.gmra.mrb[0].mxu0 %v83
    %v417 = vpop.f32.mrb[0].mxu0
    %v418 = vadd.f32 0.0, %v417
    %v419 = vpop.f32.mrb[0].mxu0
    %420 = vmatprep.mubr.f32.mxu0 0.0
    %421 = vmatmul.mubr.f32.gmra.mrb[0].mxu0 %v86
    %v422 = vpop.f32.mrb[0].mxu0
    %v423 = vadd.f32 0.0, %v422
    %v424 = vpop.f32.mrb[0].mxu0
    %425 = vmatprep.mubr.f32.mxu0 0.0
    %426 = vmatmul.mubr.f32.gmra.mrb[0].mxu0 %v89
    %v427 = vpop.f32.mrb[0].mxu0
    %v428 = vadd.f32 0.0, %v427
    %v429 = vpop.f32.mrb[0].mxu0
    %430 = vdwg.mxu0
    %431 = vmatprep.subr.mxu0 0.0
    %432 = vmatpush1.msra.mxu0 %v64
    %433 = vmatprep.subr.mxu0 0.0
    %434 = vmatpush1.msra.mxu0 %v65
    %435 = vmatprep.subr.mxu0 0.0
    %436 = vmatpush1.msra.mxu0 0.0
    %437 = vmatprep.subr.mxu0 0.0
    %438 = vmatpush1.msra.mxu0 0.0
    %439 = vmatprep.subr.mxu0 0.0
    %440 = vmatpush1.msra.mxu0 0.0
    %441 = vmatprep.subr.mxu0 0.0
    %442 = vmatpush1.msra.mxu0 0.0
    %443 = vmatprep.subr.mxu0 0.0
    %444 = vmatpush1.msra.mxu0 0.0
    %445 = vmatprep.subr.mxu0 0.0
    %446 = vmatpush1.msra.mxu0 0.0
    %447 = vmatprep.subr.mxu0 0.0
    %448 = vmatpush1.msra.mxu0 0.0
    %449 = vmatprep.subr.mxu0 0.0
    %450 = vmatpush1.msra.mxu0 0.0
    %451 = vmatprep.subr.mxu0 0.0
    %452 = vmatpush1.msra.mxu0 0.0
    %453 = vmatprep.subr.mxu0 0.0
    %454 = vmatpush1.msra.mxu0 0.0
    %455 = vmatprep.subr.mxu0 0.0
    %456 = vmatpush1.msra.mxu0 0.0
    %457 = vmatprep.subr.mxu0 0.0
    %458 = vmatpush1.msra.mxu0 0.0
    %459 = vmatprep.subr.mxu0 0.0
    %460 = vmatpush1.msra.mxu0 0.0
    %461 = vmatprep.subr.mxu0 0.0
    %462 = vmatpush1.msra.mxu0 0.0
    %463 = vmatprep.subr.mxu0 0.0
    %464 = vmatpush1.msra.mxu0 0.0
    %465 = vmatprep.subr.mxu0 0.0
    %466 = vmatpush1.msra.mxu0 0.0
    %467 = vmatprep.subr.mxu0 0.0
    %468 = vmatpush1.msra.mxu0 0.0
    %469 = vmatprep.subr.mxu0 0.0
    %470 = vmatpush1.msra.mxu0 0.0
    %471 = vmatprep.subr.mxu0 0.0
    %472 = vmatpush1.msra.mxu0 0.0
    %473 = vmatprep.subr.mxu0 0.0
    %474 = vmatpush1.msra.mxu0 0.0
    %475 = vmatprep.subr.mxu0 0.0
    %476 = vmatpush1.msra.mxu0 0.0
    %477 = vmatprep.subr.mxu0 0.0
    %478 = vmatpush1.msra.mxu0 0.0
    %479 = vmatprep.subr.mxu0 0.0
    %480 = vmatpush1.msra.mxu0 0.0
    %481 = vmatprep.subr.mxu0 0.0
    %482 = vmatpush1.msra.mxu0 0.0
    %483 = vmatprep.subr.mxu0 0.0
    %484 = vmatpush1.msra.mxu0 0.0
    %485 = vmatprep.subr.mxu0 0.0
    %486 = vmatpush1.msra.mxu0 0.0
    %487 = vmatprep.subr.mxu0 0.0
    %488 = vmatpush1.msra.mxu0 0.0
    %489 = vmatprep.subr.mxu0 0.0
    %490 = vmatpush1.msra.mxu0 0.0
    %491 = vmatprep.subr.mxu0 0.0
    %492 = vmatpush1.msra.mxu0 0.0
    %493 = vmatprep.subr.mxu0 0.0
    %494 = vmatpush1.msra.mxu0 0.0
    %495 = vmatprep.mubr.f32.mxu0 0.0
    %496 = vmatmul.mubr.f32.gmra.mrb[0].mxu0 %v80
    %v497 = vpop.f32.mrb[0].mxu0
    %v498 = vadd.f32 0.0, %v497
    %v499 = vpop.f32.mrb[0].mxu0
    %500 = vmatprep.mubr.f32.mxu0 0.0
    %501 = vmatmul.mubr.f32.gmra.mrb[0].mxu0 %v83
    %v502 = vpop.f32.mrb[0].mxu0
    %v503 = vadd.f32 0.0, %v502
    %v504 = vpop.f32.mrb[0].mxu0
    %505 = vmatprep.mubr.f32.mxu0 0.0
    %506 = vmatmul.mubr.f32.gmra.mrb[0].mxu0 %v86
    %v507 = vpop.f32.mrb[0].mxu0
    %v508 = vadd.f32 0.0, %v507
    %v509 = vpop.f32.mrb[0].mxu0
    %510 = vmatprep.mubr.f32.mxu0 0.0
    %511 = vmatmul.mubr.f32.gmra.mrb[0].mxu0 %v89
    %v512 = vpop.f32.mrb[0].mxu0
    %v513 = vadd.f32 0.0, %v512
    %v514 = vpop.f32.mrb[0].mxu0
    %515 = vdwg.mxu0
    %516 = vmatprep.subr.mxu0 0.0
    %517 = vmatpush1.msra.mxu0 %v66
    %518 = vmatprep.subr.mxu0 0.0
    %519 = vmatpush1.msra.mxu0 %v67
    %520 = vmatprep.subr.mxu0 0.0
    %521 = vmatpush1.msra.mxu0 0.0
    %522 = vmatprep.subr.mxu0 0.0
    %523 = vmatpush1.msra.mxu0 0.0
    %524 = vmatprep.subr.mxu0 0.0
    %525 = vmatpush1.msra.mxu0 0.0
    %526 = vmatprep.subr.mxu0 0.0
    %527 = vmatpush1.msra.mxu0 0.0
    %528 = vmatprep.subr.mxu0 0.0
    %529 = vmatpush1.msra.mxu0 0.0
    %530 = vmatprep.subr.mxu0 0.0
    %531 = vmatpush1.msra.mxu0 0.0
    %532 = vmatprep.subr.mxu0 0.0
    %533 = vmatpush1.msra.mxu0 0.0
    %534 = vmatprep.subr.mxu0 0.0
    %535 = vmatpush1.msra.mxu0 0.0
    %536 = vmatprep.subr.mxu0 0.0
    %537 = vmatpush1.msra.mxu0 0.0
    %538 = vmatprep.subr.mxu0 0.0
    %539 = vmatpush1.msra.mxu0 0.0
    %540 = vmatprep.subr.mxu0 0.0
    %541 = vmatpush1.msra.mxu0 0.0
    %542 = vmatprep.subr.mxu0 0.0
    %543 = vmatpush1.msra.mxu0 0.0
    %544 = vmatprep.subr.mxu0 0.0
    %545 = vmatpush1.msra.mxu0 0.0
    %546 = vmatprep.subr.mxu0 0.0
    %547 = vmatpush1.msra.mxu0 0.0
    %548 = vmatprep.subr.mxu0 0.0
    %549 = vmatpush1.msra.mxu0 0.0
    %550 = vmatprep.subr.mxu0 0.0
    %551 = vmatpush1.msra.mxu0 0.0
    %552 = vmatprep.subr.mxu0 0.0
    %553 = vmatpush1.msra.mxu0 0.0
    %554 = vmatprep.subr.mxu0 0.0
    %555 = vmatpush1.msra.mxu0 0.0
    %556 = vmatprep.subr.mxu0 0.0
    %557 = vmatpush1.msra.mxu0 0.0
    %558 = vmatprep.subr.mxu0 0.0
    %559 = vmatpush1.msra.mxu0 0.0
    %560 = vmatprep.subr.mxu0 0.0
    %561 = vmatpush1.msra.mxu0 0.0
    %562 = vmatprep.subr.mxu0 0.0
    %563 = vmatpush1.msra.mxu0 0.0
    %564 = vmatprep.subr.mxu0 0.0
    %565 = vmatpush1.msra.mxu0 0.0
    %566 = vmatprep.subr.mxu0 0.0
    %567 = vmatpush1.msra.mxu0 0.0
    %568 = vmatprep.subr.mxu0 0.0
    %569 = vmatpush1.msra.mxu0 0.0
    %570 = vmatprep.subr.mxu0 0.0
    %571 = vmatpush1.msra.mxu0 0.0
    %572 = vmatprep.subr.mxu0 0.0
    %573 = vmatpush1.msra.mxu0 0.0
    %574 = vmatprep.subr.mxu0 0.0
    %575 = vmatpush1.msra.mxu0 0.0
    %576 = vmatprep.subr.mxu0 0.0
    %577 = vmatpush1.msra.mxu0 0.0
    %578 = vmatprep.subr.mxu0 0.0
    %579 = vmatpush1.msra.mxu0 0.0
    %580 = vmatprep.mubr.f32.mxu0 0.0
    %581 = vmatmul.mubr.f32.gmra.mrb[0].mxu0 %v80
    %v582 = vpop.f32.mrb[0].mxu0
    %v583 = vadd.f32 0.0, %v582
    %v584 = vpop.f32.mrb[0].mxu0
    %585 = vmatprep.mubr.f32.mxu0 0.0
    %586 = vmatmul.mubr.f32.gmra.mrb[0].mxu0 %v83
    %v587 = vpop.f32.mrb[0].mxu0
    %v588 = vadd.f32 0.0, %v587
    %v589 = vpop.f32.mrb[0].mxu0
    %590 = vmatprep.mubr.f32.mxu0 0.0
    %591 = vmatmul.mubr.f32.gmra.mrb[0].mxu0 %v86
    %v592 = vpop.f32.mrb[0].mxu0
    %v593 = vadd.f32 0.0, %v592
    %v594 = vpop.f32.mrb[0].mxu0
    %595 = vmatprep.mubr.f32.mxu0 0.0
    %596 = vmatmul.mubr.f32.gmra.mrb[0].mxu0 %v89
    %v597 = vpop.f32.mrb[0].mxu0
    %v598 = vadd.f32 0.0, %v597
    %v599 = vpop.f32.mrb[0].mxu0
    %600 = vdwg.mxu0
    %601 = vmatprep.subr.mxu0 0.0
    %602 = vmatpush1.msra.mxu0 %v68
    %603 = vmatprep.subr.mxu0 0.0
    %604 = vmatpush1.msra.mxu0 %v69
    %605 = vmatprep.subr.mxu0 0.0
    %606 = vmatpush1.msra.mxu0 0.0
    %607 = vmatprep.subr.mxu0 0.0
    %608 = vmatpush1.msra.mxu0 0.0
    %609 = vmatprep.subr.mxu0 0.0
    %610 = vmatpush1.msra.mxu0 0.0
    %611 = vmatprep.subr.mxu0 0.0
    %612 = vmatpush1.msra.mxu0 0.0
    %613 = vmatprep.subr.mxu0 0.0
    %614 = vmatpush1.msra.mxu0 0.0
    %615 = vmatprep.subr.mxu0 0.0
    %616 = vmatpush1.msra.mxu0 0.0
    %617 = vmatprep.subr.mxu0 0.0
    %618 = vmatpush1.msra.mxu0 0.0
    %619 = vmatprep.subr.mxu0 0.0
    %620 = vmatpush1.msra.mxu0 0.0
    %621 = vmatprep.subr.mxu0 0.0
    %622 = vmatpush1.msra.mxu0 0.0
    %623 = vmatprep.subr.mxu0 0.0
    %624 = vmatpush1.msra.mxu0 0.0
    %625 = vmatprep.subr.mxu0 0.0
    %626 = vmatpush1.msra.mxu0 0.0
    %627 = vmatprep.subr.mxu0 0.0
    %628 = vmatpush1.msra.mxu0 0.0
    %629 = vmatprep.subr.mxu0 0.0
    %630 = vmatpush1.msra.mxu0 0.0
    %631 = vmatprep.subr.mxu0 0.0
    %632 = vmatpush1.msra.mxu0 0.0
    %633 = vmatprep.subr.mxu0 0.0
    %634 = vmatpush1.msra.mxu0 0.0
    %635 = vmatprep.subr.mxu0 0.0
    %636 = vmatpush1.msra.mxu0 0.0
    %637 = vmatprep.subr.mxu0 0.0
    %638 = vmatpush1.msra.mxu0 0.0
    %639 = vmatprep.subr.mxu0 0.0
    %640 = vmatpush1.msra.mxu0 0.0
    %641 = vmatprep.subr.mxu0 0.0
    %642 = vmatpush1.msra.mxu0 0.0
    %643 = vmatprep.subr.mxu0 0.0
    %644 = vmatpush1.msra.mxu0 0.0
    %645 = vmatprep.subr.mxu0 0.0
    %646 = vmatpush1.msra.mxu0 0.0
    %647 = vmatprep.subr.mxu0 0.0
    %648 = vmatpush1.msra.mxu0 0.0
    %649 = vmatprep.subr.mxu0 0.0
    %650 = vmatpush1.msra.mxu0 0.0
    %651 = vmatprep.subr.mxu0 0.0
    %652 = vmatpush1.msra.mxu0 0.0
    %653 = vmatprep.subr.mxu0 0.0
    %654 = vmatpush1.msra.mxu0 0.0
    %655 = vmatprep.subr.mxu0 0.0
    %656 = vmatpush1.msra.mxu0 0.0
    %657 = vmatprep.subr.mxu0 0.0
    %658 = vmatpush1.msra.mxu0 0.0
    %659 = vmatprep.subr.mxu0 0.0
    %660 = vmatpush1.msra.mxu0 0.0
    %661 = vmatprep.subr.mxu0 0.0
    %662 = vmatpush1.msra.mxu0 0.0
    %663 = vmatprep.subr.mxu0 0.0
    %664 = vmatpush1.msra.mxu0 0.0
    %665 = vmatprep.mubr.f32.mxu0 0.0
    %666 = vmatmul.mubr.f32.gmra.mrb[0].mxu0 %v80
    %v667 = vpop.f32.mrb[0].mxu0
    %v668 = vadd.f32 0.0, %v667
    %v669 = vpop.f32.mrb[0].mxu0
    %670 = vmatprep.mubr.f32.mxu0 0.0
    %671 = vmatmul.mubr.f32.gmra.mrb[0].mxu0 %v83
    %v672 = vpop.f32.mrb[0].mxu0
    %v673 = vadd.f32 0.0, %v672
    %v674 = vpop.f32.mrb[0].mxu0
    %675 = vmatprep.mubr.f32.mxu0 0.0
    %676 = vmatmul.mubr.f32.gmra.mrb[0].mxu0 %v86
    %v677 = vpop.f32.mrb[0].mxu0
    %v678 = vadd.f32 0.0, %v677
    %v679 = vpop.f32.mrb[0].mxu0
    %680 = vmatprep.mubr.f32.mxu0 0.0
    %681 = vmatmul.mubr.f32.gmra.mrb[0].mxu0 %v89
    %v682 = vpop.f32.mrb[0].mxu0
    %v683 = vadd.f32 0.0, %v682
    %v684 = vpop.f32.mrb[0].mxu0
    %685 = vdwg.mxu0
    %686 = vmatprep.subr.mxu0 0.0
    %687 = vmatpush1.msra.mxu0 %v70
    %688 = vmatprep.subr.mxu0 0.0
    %689 = vmatpush1.msra.mxu0 %v71
    %690 = vmatprep.subr.mxu0 0.0
    %691 = vmatpush1.msra.mxu0 0.0
    %692 = vmatprep.subr.mxu0 0.0
    %693 = vmatpush1.msra.mxu0 0.0
    %694 = vmatprep.subr.mxu0 0.0
    %695 = vmatpush1.msra.mxu0 0.0
    %696 = vmatprep.subr.mxu0 0.0
    %697 = vmatpush1.msra.mxu0 0.0
    %698 = vmatprep.subr.mxu0 0.0
    %699 = vmatpush1.msra.mxu0 0.0
    %700 = vmatprep.subr.mxu0 0.0
    %701 = vmatpush1.msra.mxu0 0.0
    %702 = vmatprep.subr.mxu0 0.0
    %703 = vmatpush1.msra.mxu0 0.0
    %704 = vmatprep.subr.mxu0 0.0
    %705 = vmatpush1.msra.mxu0 0.0
    %706 = vmatprep.subr.mxu0 0.0
    %707 = vmatpush1.msra.mxu0 0.0
    %708 = vmatprep.subr.mxu0 0.0
    %709 = vmatpush1.msra.mxu0 0.0
    %710 = vmatprep.subr.mxu0 0.0
    %711 = vmatpush1.msra.mxu0 0.0
    %712 = vmatprep.subr.mxu0 0.0
    %713 = vmatpush1.msra.mxu0 0.0
    %714 = vmatprep.subr.mxu0 0.0
    %715 = vmatpush1.msra.mxu0 0.0
    %716 = vmatprep.subr.mxu0 0.0
    %717 = vmatpush1.msra.mxu0 0.0
    %718 = vmatprep.subr.mxu0 0.0
    %719 = vmatpush1.msra.mxu0 0.0
    %720 = vmatprep.subr.mxu0 0.0
    %721 = vmatpush1.msra.mxu0 0.0
    %722 = vmatprep.subr.mxu0 0.0
    %723 = vmatpush1.msra.mxu0 0.0
    %724 = vmatprep.subr.mxu0 0.0
    %725 = vmatpush1.msra.mxu0 0.0
    %726 = vmatprep.subr.mxu0 0.0
    %727 = vmatpush1.msra.mxu0 0.0
    %728 = vmatprep.subr.mxu0 0.0
    %729 = vmatpush1.msra.mxu0 0.0
    %730 = vmatprep.subr.mxu0 0.0
    %731 = vmatpush1.msra.mxu0 0.0
    %732 = vmatprep.subr.mxu0 0.0
    %733 = vmatpush1.msra.mxu0 0.0
    %734 = vmatprep.subr.mxu0 0.0
    %735 = vmatpush1.msra.mxu0 0.0
    %736 = vmatprep.subr.mxu0 0.0
    %737 = vmatpush1.msra.mxu0 0.0
    %738 = vmatprep.subr.mxu0 0.0
    %739 = vmatpush1.msra.mxu0 0.0
    %740 = vmatprep.subr.mxu0 0.0
    %741 = vmatpush1.msra.mxu0 0.0
    %742 = vmatprep.subr.mxu0 0.0
    %743 = vmatpush1.msra.mxu0 0.0
    %744 = vmatprep.subr.mxu0 0.0
    %745 = vmatpush1.msra.mxu0 0.0
    %746 = vmatprep.subr.mxu0 0.0
    %747 = vmatpush1.msra.mxu0 0.0
    %748 = vmatprep.subr.mxu0 0.0
    %749 = vmatpush1.msra.mxu0 0.0
    %750 = vmatprep.mubr.f32.mxu0 0.0
    %751 = vmatmul.mubr.f32.gmra.mrb[0].mxu0 %v80
    %v752 = vpop.f32.mrb[0].mxu0
    %v753 = vadd.f32 0.0, %v752
    %v754 = vpop.f32.mrb[0].mxu0
    %755 = vmatprep.mubr.f32.mxu0 0.0
    %756 = vmatmul.mubr.f32.gmra.mrb[0].mxu0 %v83
    %v757 = vpop.f32.mrb[0].mxu0
    %v758 = vadd.f32 0.0, %v757
    %v759 = vpop.f32.mrb[0].mxu0
    %760 = vmatprep.mubr.f32.mxu0 0.0
    %761 = vmatmul.mubr.f32.gmra.mrb[0].mxu0 %v86
    %v762 = vpop.f32.mrb[0].mxu0
    %v763 = vadd.f32 0.0, %v762
    %v764 = vpop.f32.mrb[0].mxu0
    %765 = vmatprep.mubr.f32.mxu0 0.0
    %766 = vmatmul.mubr.f32.gmra.mrb[0].mxu0 %v89
    %v767 = vpop.f32.mrb[0].mxu0
    %v768 = vadd.f32 0.0, %v767
    %v769 = vpop.f32.mrb[0].mxu0
    %770 = vdwg.mxu0
    %v772 = vsel %vm78, %v158, 0
    %v775 = vsel %vm78, %v163, 0
    %v778 = vsel %vm78, %v168, 0
    %v781 = vsel %vm78, %v173, 0
    %783 = vmatprep.subr.mxu0 0.0
    %784 = vmatpush1.msra.mxu0 %v76
    %785 = vmatprep.subr.mxu0 0.0
    %786 = vmatpush1.msra.mxu0 %v77
    %787 = vmatprep.subr.mxu0 0.0
    %788 = vmatpush1.msra.mxu0 0.0
    %789 = vmatprep.subr.mxu0 0.0
    %790 = vmatpush1.msra.mxu0 0.0
    %791 = vmatprep.subr.mxu0 0.0
    %792 = vmatpush1.msra.mxu0 0.0
    %793 = vmatprep.subr.mxu0 0.0
    %794 = vmatpush1.msra.mxu0 0.0
    %795 = vmatprep.subr.mxu0 0.0
    %796 = vmatpush1.msra.mxu0 0.0
    %797 = vmatprep.subr.mxu0 0.0
    %798 = vmatpush1.msra.mxu0 0.0
    %799 = vmatprep.subr.mxu0 0.0
    %800 = vmatpush1.msra.mxu0 0.0
    %801 = vmatprep.subr.mxu0 0.0
    %802 = vmatpush1.msra.mxu0 0.0
    %803 = vmatprep.subr.mxu0 0.0
    %804 = vmatpush1.msra.mxu0 0.0
    %805 = vmatprep.subr.mxu0 0.0
    %806 = vmatpush1.msra.mxu0 0.0
    %807 = vmatprep.subr.mxu0 0.0
    %808 = vmatpush1.msra.mxu0 0.0
    %809 = vmatprep.subr.mxu0 0.0
    %810 = vmatpush1.msra.mxu0 0.0
    %811 = vmatprep.subr.mxu0 0.0
    %812 = vmatpush1.msra.mxu0 0.0
    %813 = vmatprep.subr.mxu0 0.0
    %814 = vmatpush1.msra.mxu0 0.0
    %815 = vmatprep.subr.mxu0 0.0
    %816 = vmatpush1.msra.mxu0 0.0
    %817 = vmatprep.subr.mxu0 0.0
    %818 = vmatpush1.msra.mxu0 0.0
    %819 = vmatprep.subr.mxu0 0.0
    %820 = vmatpush1.msra.mxu0 0.0
    %821 = vmatprep.subr.mxu0 0.0
    %822 = vmatpush1.msra.mxu0 0.0
    %823 = vmatprep.subr.mxu0 0.0
    %824 = vmatpush1.msra.mxu0 0.0
    %825 = vmatprep.subr.mxu0 0.0
    %826 = vmatpush1.msra.mxu0 0.0
    %827 = vmatprep.subr.mxu0 0.0
    %828 = vmatpush1.msra.mxu0 0.0
    %829 = vmatprep.subr.mxu0 0.0
    %830 = vmatpush1.msra.mxu0 0.0
    %831 = vmatprep.subr.mxu0 0.0
    %832 = vmatpush1.msra.mxu0 0.0
    %833 = vmatprep.subr.mxu0 0.0
    %834 = vmatpush1.msra.mxu0 0.0
    %835 = vmatprep.subr.mxu0 0.0
    %836 = vmatpush1.msra.mxu0 0.0
    %837 = vmatprep.subr.mxu0 0.0
    %838 = vmatpush1.msra.mxu0 0.0
    %839 = vmatprep.subr.mxu0 0.0
    %840 = vmatpush1.msra.mxu0 0.0
    %841 = vmatprep.subr.mxu0 0.0
    %842 = vmatpush1.msra.mxu0 0.0
    %843 = vmatprep.subr.mxu0 0.0
    %844 = vmatpush1.msra.mxu0 0.0
    %845 = vmatprep.subr.mxu0 0.0
    %846 = vmatpush1.msra.mxu0 0.0
    %847 = vmatprep.mubr.f32.mxu0 0.0
    %848 = vmatmul.mubr.f32.gmra.mrb[0].mxu0 %v772
    %v849 = vpop.f32.mrb[0].mxu0
    %v850 = vadd.f32 0.0, %v849
    %v851 = vpop.f32.mrb[0].mxu0
    %852 = vmatprep.mubr.f32.mxu0 0.0
    %853 = vmatmul.mubr.f32.gmra.mrb[0].mxu0 %v775
    %v854 = vpop.f32.mrb[0].mxu0
    %v855 = vadd.f32 0.0, %v854
    %v856 = vpop.f32.mrb[0].mxu0
    %857 = vmatprep.mubr.f32.mxu0 0.0
    %858 = vmatmul.mubr.f32.gmra.mrb[0].mxu0 %v778
    %v859 = vpop.f32.mrb[0].mxu0
    %v860 = vadd.f32 0.0, %v859
    %v861 = vpop.f32.mrb[0].mxu0
    %862 = vmatprep.mubr.f32.mxu0 0.0
    %863 = vmatmul.mubr.f32.gmra.mrb[0].mxu0 %v781
    %v864 = vpop.f32.mrb[0].mxu0
    %v865 = vadd.f32 0.0, %v864
    %v866 = vpop.f32.mrb[0].mxu0
    %867 = vdwg.mxu0
    %v869 = vsel %vm78, %v243, 0
    %v872 = vsel %vm78, %v248, 0
    %v875 = vsel %vm78, %v253, 0
    %v878 = vsel %vm78, %v258, 0
    %880 = vmatprep.subr.mxu0 0.0
    %881 = vmatpush1.msra.mxu0 %v76
    %882 = vmatprep.subr.mxu0 0.0
    %883 = vmatpush1.msra.mxu0 %v77
    %884 = vmatprep.subr.mxu0 0.0
    %885 = vmatpush1.msra.mxu0 0.0
    %886 = vmatprep.subr.mxu0 0.0
    %887 = vmatpush1.msra.mxu0 0.0
    %888 = vmatprep.subr.mxu0 0.0
    %889 = vmatpush1.msra.mxu0 0.0
    %890 = vmatprep.subr.mxu0 0.0
    %891 = vmatpush1.msra.mxu0 0.0
    %892 = vmatprep.subr.mxu0 0.0
    %893 = vmatpush1.msra.mxu0 0.0
    %894 = vmatprep.subr.mxu0 0.0
    %895 = vmatpush1.msra.mxu0 0.0
    %896 = vmatprep.subr.mxu0 0.0
    %897 = vmatpush1.msra.mxu0 0.0
    %898 = vmatprep.subr.mxu0 0.0
    %899 = vmatpush1.msra.mxu0 0.0
    %900 = vmatprep.subr.mxu0 0.0
    %901 = vmatpush1.msra.mxu0 0.0
    %902 = vmatprep.subr.mxu0 0.0
    %903 = vmatpush1.msra.mxu0 0.0
    %904 = vmatprep.subr.mxu0 0.0
    %905 = vmatpush1.msra.mxu0 0.0
    %906 = vmatprep.subr.mxu0 0.0
    %907 = vmatpush1.msra.mxu0 0.0
    %908 = vmatprep.subr.mxu0 0.0
    %909 = vmatpush1.msra.mxu0 0.0
    %910 = vmatprep.subr.mxu0 0.0
    %911 = vmatpush1.msra.mxu0 0.0
    %912 = vmatprep.subr.mxu0 0.0
    %913 = vmatpush1.msra.mxu0 0.0
    %914 = vmatprep.subr.mxu0 0.0
    %915 = vmatpush1.msra.mxu0 0.0
    %916 = vmatprep.subr.mxu0 0.0
    %917 = vmatpush1.msra.mxu0 0.0
    %918 = vmatprep.subr.mxu0 0.0
    %919 = vmatpush1.msra.mxu0 0.0
    %920 = vmatprep.subr.mxu0 0.0
    %921 = vmatpush1.msra.mxu0 0.0
    %922 = vmatprep.subr.mxu0 0.0
    %923 = vmatpush1.msra.mxu0 0.0
    %924 = vmatprep.subr.mxu0 0.0
    %925 = vmatpush1.msra.mxu0 0.0
    %926 = vmatprep.subr.mxu0 0.0
    %927 = vmatpush1.msra.mxu0 0.0
    %928 = vmatprep.subr.mxu0 0.0
    %929 = vmatpush1.msra.mxu0 0.0
    %930 = vmatprep.subr.mxu0 0.0
    %931 = vmatpush1.msra.mxu0 0.0
    %932 = vmatprep.subr.mxu0 0.0
    %933 = vmatpush1.msra.mxu0 0.0
    %934 = vmatprep.subr.mxu0 0.0
    %935 = vmatpush1.msra.mxu0 0.0
    %936 = vmatprep.subr.mxu0 0.0
    %937 = vmatpush1.msra.mxu0 0.0
    %938 = vmatprep.subr.mxu0 0.0
    %939 = vmatpush1.msra.mxu0 0.0
    %940 = vmatprep.subr.mxu0 0.0
    %941 = vmatpush1.msra.mxu0 0.0
    %942 = vmatprep.subr.mxu0 0.0
    %943 = vmatpush1.msra.mxu0 0.0
    %944 = vmatprep.mubr.f32.mxu0 0.0
    %945 = vmatmul.mubr.f32.gmra.mrb[0].mxu0 %v869
    %v946 = vpop.f32.mrb[0].mxu0
    %v947 = vadd.f32 0.0, %v946
    %v948 = vpop.f32.mrb[0].mxu0
    %949 = vmatprep.mubr.f32.mxu0 0.0
    %950 = vmatmul.mubr.f32.gmra.mrb[0].mxu0 %v872
    %v951 = vpop.f32.mrb[0].mxu0
    %v952 = vadd.f32 0.0, %v951
    %v953 = vpop.f32.mrb[0].mxu0
    %954 = vmatprep.mubr.f32.mxu0 0.0
    %955 = vmatmul.mubr.f32.gmra.mrb[0].mxu0 %v875
    %v956 = vpop.f32.mrb[0].mxu0
    %v957 = vadd.f32 0.0, %v956
    %v958 = vpop.f32.mrb[0].mxu0
    %959 = vmatprep.mubr.f32.mxu0 0.0
    %960 = vmatmul.mubr.f32.gmra.mrb[0].mxu0 %v878
    %v961 = vpop.f32.mrb[0].mxu0
    %v962 = vadd.f32 0.0, %v961
    %v963 = vpop.f32.mrb[0].mxu0
    %964 = vdwg.mxu0
    %v966 = vsel %vm78, %v328, 0
    %v969 = vsel %vm78, %v333, 0
    %v972 = vsel %vm78, %v338, 0
    %v975 = vsel %vm78, %v343, 0
    %977 = vmatprep.subr.mxu0 0.0
    %978 = vmatpush1.msra.mxu0 %v76
    %979 = vmatprep.subr.mxu0 0.0
    %980 = vmatpush1.msra.mxu0 %v77
    %981 = vmatprep.subr.mxu0 0.0
    %982 = vmatpush1.msra.mxu0 0.0
    %983 = vmatprep.subr.mxu0 0.0
    %984 = vmatpush1.msra.mxu0 0.0
    %985 = vmatprep.subr.mxu0 0.0
    %986 = vmatpush1.msra.mxu0 0.0
    %987 = vmatprep.subr.mxu0 0.0
    %988 = vmatpush1.msra.mxu0 0.0
    %989 = vmatprep.subr.mxu0 0.0
    %990 = vmatpush1.msra.mxu0 0.0
    %991 = vmatprep.subr.mxu0 0.0
    %992 = vmatpush1.msra.mxu0 0.0
    %993 = vmatprep.subr.mxu0 0.0
    %994 = vmatpush1.msra.mxu0 0.0
    %995 = vmatprep.subr.mxu0 0.0
    %996 = vmatpush1.msra.mxu0 0.0
    %997 = vmatprep.subr.mxu0 0.0
    %998 = vmatpush1.msra.mxu0 0.0
    %999 = vmatprep.subr.mxu0 0.0
    %1000 = vmatpush1.msra.mxu0 0.0
    %1001 = vmatprep.subr.mxu0 0.0
    %1002 = vmatpush1.msra.mxu0 0.0
    %1003 = vmatprep.subr.mxu0 0.0
    %1004 = vmatpush1.msra.mxu0 0.0
    %1005 = vmatprep.subr.mxu0 0.0
    %1006 = vmatpush1.msra.mxu0 0.0
    %1007 = vmatprep.subr.mxu0 0.0
    %1008 = vmatpush1.msra.mxu0 0.0
    %1009 = vmatprep.subr.mxu0 0.0
    %1010 = vmatpush1.msra.mxu0 0.0
    %1011 = vmatprep.subr.mxu0 0.0
    %1012 = vmatpush1.msra.mxu0 0.0
    %1013 = vmatprep.subr.mxu0 0.0
    %1014 = vmatpush1.msra.mxu0 0.0
    %1015 = vmatprep.subr.mxu0 0.0
    %1016 = vmatpush1.msra.mxu0 0.0
    %1017 = vmatprep.subr.mxu0 0.0
    %1018 = vmatpush1.msra.mxu0 0.0
    %1019 = vmatprep.subr.mxu0 0.0
    %1020 = vmatpush1.msra.mxu0 0.0
    %1021 = vmatprep.subr.mxu0 0.0
    %1022 = vmatpush1.msra.mxu0 0.0
    %1023 = vmatprep.subr.mxu0 0.0
    %1024 = vmatpush1.msra.mxu0 0.0
    %1025 = vmatprep.subr.mxu0 0.0
    %1026 = vmatpush1.msra.mxu0 0.0
    %1027 = vmatprep.subr.mxu0 0.0
    %1028 = vmatpush1.msra.mxu0 0.0
    %1029 = vmatprep.subr.mxu0 0.0
    %1030 = vmatpush1.msra.mxu0 0.0
    %1031 = vmatprep.subr.mxu0 0.0
    %1032 = vmatpush1.msra.mxu0 0.0
    %1033 = vmatprep.subr.mxu0 0.0
    %1034 = vmatpush1.msra.mxu0 0.0
    %1035 = vmatprep.subr.mxu0 0.0
    %1036 = vmatpush1.msra.mxu0 0.0
    %1037 = vmatprep.subr.mxu0 0.0
    %1038 = vmatpush1.msra.mxu0 0.0
    %1039 = vmatprep.subr.mxu0 0.0
    %1040 = vmatpush1.msra.mxu0 0.0
    %1041 = vmatprep.mubr.f32.mxu0 0.0
    %1042 = vmatmul.mubr.f32.gmra.mrb[0].mxu0 %v966
    %v1043 = vpop.f32.mrb[0].mxu0
    %v1044 = vadd.f32 0.0, %v1043
    %v1045 = vpop.f32.mrb[0].mxu0
    %1046 = vmatprep.mubr.f32.mxu0 0.0
    %1047 = vmatmul.mubr.f32.gmra.mrb[0].mxu0 %v969
    %v1048 = vpop.f32.mrb[0].mxu0
    %v1049 = vadd.f32 0.0, %v1048
    %v1050 = vpop.f32.mrb[0].mxu0
    %1051 = vmatprep.mubr.f32.mxu0 0.0
    %1052 = vmatmul.mubr.f32.gmra.mrb[0].mxu0 %v972
    %v1053 = vpop.f32.mrb[0].mxu0
    %v1054 = vadd.f32 0.0, %v1053
    %v1055 = vpop.f32.mrb[0].mxu0
    %1056 = vmatprep.mubr.f32.mxu0 0.0
    %1057 = vmatmul.mubr.f32.gmra.mrb[0].mxu0 %v975
    %v1058 = vpop.f32.mrb[0].mxu0
    %v1059 = vadd.f32 0.0, %v1058
    %v1060 = vpop.f32.mrb[0].mxu0
    %1061 = vdwg.mxu0
    %v1063 = vsel %vm78, %v413, 0
    %v1066 = vsel %vm78, %v418, 0
    %v1069 = vsel %vm78, %v423, 0
    %v1072 = vsel %vm78, %v428, 0
    %1074 = vmatprep.subr.mxu0 0.0
    %1075 = vmatpush1.msra.mxu0 %v76
    %1076 = vmatprep.subr.mxu0 0.0
    %1077 = vmatpush1.msra.mxu0 %v77
    %1078 = vmatprep.subr.mxu0 0.0
    %1079 = vmatpush1.msra.mxu0 0.0
    %1080 = vmatprep.subr.mxu0 0.0
    %1081 = vmatpush1.msra.mxu0 0.0
    %1082 = vmatprep.subr.mxu0 0.0
    %1083 = vmatpush1.msra.mxu0 0.0
    %1084 = vmatprep.subr.mxu0 0.0
    %1085 = vmatpush1.msra.mxu0 0.0
    %1086 = vmatprep.subr.mxu0 0.0
    %1087 = vmatpush1.msra.mxu0 0.0
    %1088 = vmatprep.subr.mxu0 0.0
    %1089 = vmatpush1.msra.mxu0 0.0
    %1090 = vmatprep.subr.mxu0 0.0
    %1091 = vmatpush1.msra.mxu0 0.0
    %1092 = vmatprep.subr.mxu0 0.0
    %1093 = vmatpush1.msra.mxu0 0.0
    %1094 = vmatprep.subr.mxu0 0.0
    %1095 = vmatpush1.msra.mxu0 0.0
    %1096 = vmatprep.subr.mxu0 0.0
    %1097 = vmatpush1.msra.mxu0 0.0
    %1098 = vmatprep.subr.mxu0 0.0
    %1099 = vmatpush1.msra.mxu0 0.0
    %1100 = vmatprep.subr.mxu0 0.0
    %1101 = vmatpush1.msra.mxu0 0.0
    %1102 = vmatprep.subr.mxu0 0.0
    %1103 = vmatpush1.msra.mxu0 0.0
    %1104 = vmatprep.subr.mxu0 0.0
    %1105 = vmatpush1.msra.mxu0 0.0
    %1106 = vmatprep.subr.mxu0 0.0
    %1107 = vmatpush1.msra.mxu0 0.0
    %1108 = vmatprep.subr.mxu0 0.0
    %1109 = vmatpush1.msra.mxu0 0.0
    %1110 = vmatprep.subr.mxu0 0.0
    %1111 = vmatpush1.msra.mxu0 0.0
    %1112 = vmatprep.subr.mxu0 0.0
    %1113 = vmatpush1.msra.mxu0 0.0
    %1114 = vmatprep.subr.mxu0 0.0
    %1115 = vmatpush1.msra.mxu0 0.0
    %1116 = vmatprep.subr.mxu0 0.0
    %1117 = vmatpush1.msra.mxu0 0.0
    %1118 = vmatprep.subr.mxu0 0.0
    %1119 = vmatpush1.msra.mxu0 0.0
    %1120 = vmatprep.subr.mxu0 0.0
    %1121 = vmatpush1.msra.mxu0 0.0
    %1122 = vmatprep.subr.mxu0 0.0
    %1123 = vmatpush1.msra.mxu0 0.0
    %1124 = vmatprep.subr.mxu0 0.0
    %1125 = vmatpush1.msra.mxu0 0.0
    %1126 = vmatprep.subr.mxu0 0.0
    %1127 = vmatpush1.msra.mxu0 0.0
    %1128 = vmatprep.subr.mxu0 0.0
    %1129 = vmatpush1.msra.mxu0 0.0
    %1130 = vmatprep.subr.mxu0 0.0
    %1131 = vmatpush1.msra.mxu0 0.0
    %1132 = vmatprep.subr.mxu0 0.0
    %1133 = vmatpush1.msra.mxu0 0.0
    %1134 = vmatprep.subr.mxu0 0.0
    %1135 = vmatpush1.msra.mxu0 0.0
    %1136 = vmatprep.subr.mxu0 0.0
    %1137 = vmatpush1.msra.mxu0 0.0
    %1138 = vmatprep.mubr.f32.mxu0 0.0
    %1139 = vmatmul.mubr.f32.gmra.mrb[0].mxu0 %v1063
    %v1140 = vpop.f32.mrb[0].mxu0
    %v1141 = vadd.f32 0.0, %v1140
    %v1142 = vpop.f32.mrb[0].mxu0
    %1143 = vmatprep.mubr.f32.mxu0 0.0
    %1144 = vmatmul.mubr.f32.gmra.mrb[0].mxu0 %v1066
    %v1145 = vpop.f32.mrb[0].mxu0
    %v1146 = vadd.f32 0.0, %v1145
    %v1147 = vpop.f32.mrb[0].mxu0
    %1148 = vmatprep.mubr.f32.mxu0 0.0
    %1149 = vmatmul.mubr.f32.gmra.mrb[0].mxu0 %v1069
    %v1150 = vpop.f32.mrb[0].mxu0
    %v1151 = vadd.f32 0.0, %v1150
    %v1152 = vpop.f32.mrb[0].mxu0
    %1153 = vmatprep.mubr.f32.mxu0 0.0
    %1154 = vmatmul.mubr.f32.gmra.mrb[0].mxu0 %v1072
    %v1155 = vpop.f32.mrb[0].mxu0
    %v1156 = vadd.f32 0.0, %v1155
    %v1157 = vpop.f32.mrb[0].mxu0
    %1158 = vdwg.mxu0
    %v1160 = vsel %vm78, %v498, 0
    %v1163 = vsel %vm78, %v503, 0
    %v1166 = vsel %vm78, %v508, 0
    %v1169 = vsel %vm78, %v513, 0
    %1171 = vmatprep.subr.mxu0 0.0
    %1172 = vmatpush1.msra.mxu0 %v76
    %1173 = vmatprep.subr.mxu0 0.0
    %1174 = vmatpush1.msra.mxu0 %v77
    %1175 = vmatprep.subr.mxu0 0.0
    %1176 = vmatpush1.msra.mxu0 0.0
    %1177 = vmatprep.subr.mxu0 0.0
    %1178 = vmatpush1.msra.mxu0 0.0
    %1179 = vmatprep.subr.mxu0 0.0
    %1180 = vmatpush1.msra.mxu0 0.0
    %1181 = vmatprep.subr.mxu0 0.0
    %1182 = vmatpush1.msra.mxu0 0.0
    %1183 = vmatprep.subr.mxu0 0.0
    %1184 = vmatpush1.msra.mxu0 0.0
    %1185 = vmatprep.subr.mxu0 0.0
    %1186 = vmatpush1.msra.mxu0 0.0
    %1187 = vmatprep.subr.mxu0 0.0
    %1188 = vmatpush1.msra.mxu0 0.0
    %1189 = vmatprep.subr.mxu0 0.0
    %1190 = vmatpush1.msra.mxu0 0.0
    %1191 = vmatprep.subr.mxu0 0.0
    %1192 = vmatpush1.msra.mxu0 0.0
    %1193 = vmatprep.subr.mxu0 0.0
    %1194 = vmatpush1.msra.mxu0 0.0
    %1195 = vmatprep.subr.mxu0 0.0
    %1196 = vmatpush1.msra.mxu0 0.0
    %1197 = vmatprep.subr.mxu0 0.0
    %1198 = vmatpush1.msra.mxu0 0.0
    %1199 = vmatprep.subr.mxu0 0.0
    %1200 = vmatpush1.msra.mxu0 0.0
    %1201 = vmatprep.subr.mxu0 0.0
    %1202 = vmatpush1.msra.mxu0 0.0
    %1203 = vmatprep.subr.mxu0 0.0
    %1204 = vmatpush1.msra.mxu0 0.0
    %1205 = vmatprep.subr.mxu0 0.0
    %1206 = vmatpush1.msra.mxu0 0.0
    %1207 = vmatprep.subr.mxu0 0.0
    %1208 = vmatpush1.msra.mxu0 0.0
    %1209 = vmatprep.subr.mxu0 0.0
    %1210 = vmatpush1.msra.mxu0 0.0
    %1211 = vmatprep.subr.mxu0 0.0
    %1212 = vmatpush1.msra.mxu0 0.0
    %1213 = vmatprep.subr.mxu0 0.0
    %1214 = vmatpush1.msra.mxu0 0.0
    %1215 = vmatprep.subr.mxu0 0.0
    %1216 = vmatpush1.msra.mxu0 0.0
    %1217 = vmatprep.subr.mxu0 0.0
    %1218 = vmatpush1.msra.mxu0 0.0
    %1219 = vmatprep.subr.mxu0 0.0
    %1220 = vmatpush1.msra.mxu0 0.0
    %1221 = vmatprep.subr.mxu0 0.0
    %1222 = vmatpush1.msra.mxu0 0.0
    %1223 = vmatprep.subr.mxu0 0.0
    %1224 = vmatpush1.msra.mxu0 0.0
    %1225 = vmatprep.subr.mxu0 0.0
    %1226 = vmatpush1.msra.mxu0 0.0
    %1227 = vmatprep.subr.mxu0 0.0
    %1228 = vmatpush1.msra.mxu0 0.0
    %1229 = vmatprep.subr.mxu0 0.0
    %1230 = vmatpush1.msra.mxu0 0.0
    %1231 = vmatprep.subr.mxu0 0.0
    %1232 = vmatpush1.msra.mxu0 0.0
    %1233 = vmatprep.subr.mxu0 0.0
    %1234 = vmatpush1.msra.mxu0 0.0
    %1235 = vmatprep.mubr.f32.mxu0 0.0
    %1236 = vmatmul.mubr.f32.gmra.mrb[0].mxu0 %v1160
    %v1237 = vpop.f32.mrb[0].mxu0
    %v1238 = vadd.f32 0.0, %v1237
    %v1239 = vpop.f32.mrb[0].mxu0
    %1240 = vmatprep.mubr.f32.mxu0 0.0
    %1241 = vmatmul.mubr.f32.gmra.mrb[0].mxu0 %v1163
    %v1242 = vpop.f32.mrb[0].mxu0
    %v1243 = vadd.f32 0.0, %v1242
    %v1244 = vpop.f32.mrb[0].mxu0
    %1245 = vmatprep.mubr.f32.mxu0 0.0
    %1246 = vmatmul.mubr.f32.gmra.mrb[0].mxu0 %v1166
    %v1247 = vpop.f32.mrb[0].mxu0
    %v1248 = vadd.f32 0.0, %v1247
    %v1249 = vpop.f32.mrb[0].mxu0
    %1250 = vmatprep.mubr.f32.mxu0 0.0
    %1251 = vmatmul.mubr.f32.gmra.mrb[0].mxu0 %v1169
    %v1252 = vpop.f32.mrb[0].mxu0
    %v1253 = vadd.f32 0.0, %v1252
    %v1254 = vpop.f32.mrb[0].mxu0
    %1255 = vdwg.mxu0
    %v1257 = vsel %vm78, %v583, 0
    %v1260 = vsel %vm78, %v588, 0
    %v1263 = vsel %vm78, %v593, 0
    %v1266 = vsel %vm78, %v598, 0
    %1268 = vmatprep.subr.mxu0 0.0
    %1269 = vmatpush1.msra.mxu0 %v76
    %1270 = vmatprep.subr.mxu0 0.0
    %1271 = vmatpush1.msra.mxu0 %v77
    %1272 = vmatprep.subr.mxu0 0.0
    %1273 = vmatpush1.msra.mxu0 0.0
    %1274 = vmatprep.subr.mxu0 0.0
    %1275 = vmatpush1.msra.mxu0 0.0
    %1276 = vmatprep.subr.mxu0 0.0
    %1277 = vmatpush1.msra.mxu0 0.0
    %1278 = vmatprep.subr.mxu0 0.0
    %1279 = vmatpush1.msra.mxu0 0.0
    %1280 = vmatprep.subr.mxu0 0.0
    %1281 = vmatpush1.msra.mxu0 0.0
    %1282 = vmatprep.subr.mxu0 0.0
    %1283 = vmatpush1.msra.mxu0 0.0
    %1284 = vmatprep.subr.mxu0 0.0
    %1285 = vmatpush1.msra.mxu0 0.0
    %1286 = vmatprep.subr.mxu0 0.0
    %1287 = vmatpush1.msra.mxu0 0.0
    %1288 = vmatprep.subr.mxu0 0.0
    %1289 = vmatpush1.msra.mxu0 0.0
    %1290 = vmatprep.subr.mxu0 0.0
    %1291 = vmatpush1.msra.mxu0 0.0
    %1292 = vmatprep.subr.mxu0 0.0
    %1293 = vmatpush1.msra.mxu0 0.0
    %1294 = vmatprep.subr.mxu0 0.0
    %1295 = vmatpush1.msra.mxu0 0.0
    %1296 = vmatprep.subr.mxu0 0.0
    %1297 = vmatpush1.msra.mxu0 0.0
    %1298 = vmatprep.subr.mxu0 0.0
    %1299 = vmatpush1.msra.mxu0 0.0
    %1300 = vmatprep.subr.mxu0 0.0
    %1301 = vmatpush1.msra.mxu0 0.0
    %1302 = vmatprep.subr.mxu0 0.0
    %1303 = vmatpush1.msra.mxu0 0.0
    %1304 = vmatprep.subr.mxu0 0.0
    %1305 = vmatpush1.msra.mxu0 0.0
    %1306 = vmatprep.subr.mxu0 0.0
    %1307 = vmatpush1.msra.mxu0 0.0
    %1308 = vmatprep.subr.mxu0 0.0
    %1309 = vmatpush1.msra.mxu0 0.0
    %1310 = vmatprep.subr.mxu0 0.0
    %1311 = vmatpush1.msra.mxu0 0.0
    %1312 = vmatprep.subr.mxu0 0.0
    %1313 = vmatpush1.msra.mxu0 0.0
    %1314 = vmatprep.subr.mxu0 0.0
    %1315 = vmatpush1.msra.mxu0 0.0
    %1316 = vmatprep.subr.mxu0 0.0
    %1317 = vmatpush1.msra.mxu0 0.0
    %1318 = vmatprep.subr.mxu0 0.0
    %1319 = vmatpush1.msra.mxu0 0.0
    %1320 = vmatprep.subr.mxu0 0.0
    %1321 = vmatpush1.msra.mxu0 0.0
    %1322 = vmatprep.subr.mxu0 0.0
    %1323 = vmatpush1.msra.mxu0 0.0
    %1324 = vmatprep.subr.mxu0 0.0
    %1325 = vmatpush1.msra.mxu0 0.0
    %1326 = vmatprep.subr.mxu0 0.0
    %1327 = vmatpush1.msra.mxu0 0.0
    %1328 = vmatprep.subr.mxu0 0.0
    %1329 = vmatpush1.msra.mxu0 0.0
    %1330 = vmatprep.subr.mxu0 0.0
    %1331 = vmatpush1.msra.mxu0 0.0
    %1332 = vmatprep.mubr.f32.mxu0 0.0
    %1333 = vmatmul.mubr.f32.gmra.mrb[0].mxu0 %v1257
    %v1334 = vpop.f32.mrb[0].mxu0
    %v1335 = vadd.f32 0.0, %v1334
    %v1336 = vpop.f32.mrb[0].mxu0
    %1337 = vmatprep.mubr.f32.mxu0 0.0
    %1338 = vmatmul.mubr.f32.gmra.mrb[0].mxu0 %v1260
    %v1339 = vpop.f32.mrb[0].mxu0
    %v1340 = vadd.f32 0.0, %v1339
    %v1341 = vpop.f32.mrb[0].mxu0
    %1342 = vmatprep.mubr.f32.mxu0 0.0
    %1343 = vmatmul.mubr.f32.gmra.mrb[0].mxu0 %v1263
    %v1344 = vpop.f32.mrb[0].mxu0
    %v1345 = vadd.f32 0.0, %v1344
    %v1346 = vpop.f32.mrb[0].mxu0
    %1347 = vmatprep.mubr.f32.mxu0 0.0
    %1348 = vmatmul.mubr.f32.gmra.mrb[0].mxu0 %v1266
    %v1349 = vpop.f32.mrb[0].mxu0
    %v1350 = vadd.f32 0.0, %v1349
    %v1351 = vpop.f32.mrb[0].mxu0
    %1352 = vdwg.mxu0
    %v1354 = vsel %vm78, %v668, 0
    %v1357 = vsel %vm78, %v673, 0
    %v1360 = vsel %vm78, %v678, 0
    %v1363 = vsel %vm78, %v683, 0
    %1365 = vmatprep.subr.mxu0 0.0
    %1366 = vmatpush1.msra.mxu0 %v76
    %1367 = vmatprep.subr.mxu0 0.0
    %1368 = vmatpush1.msra.mxu0 %v77
    %1369 = vmatprep.subr.mxu0 0.0
    %1370 = vmatpush1.msra.mxu0 0.0
    %1371 = vmatprep.subr.mxu0 0.0
    %1372 = vmatpush1.msra.mxu0 0.0
    %1373 = vmatprep.subr.mxu0 0.0
    %1374 = vmatpush1.msra.mxu0 0.0
    %1375 = vmatprep.subr.mxu0 0.0
    %1376 = vmatpush1.msra.mxu0 0.0
    %1377 = vmatprep.subr.mxu0 0.0
    %1378 = vmatpush1.msra.mxu0 0.0
    %1379 = vmatprep.subr.mxu0 0.0
    %1380 = vmatpush1.msra.mxu0 0.0
    %1381 = vmatprep.subr.mxu0 0.0
    %1382 = vmatpush1.msra.mxu0 0.0
    %1383 = vmatprep.subr.mxu0 0.0
    %1384 = vmatpush1.msra.mxu0 0.0
    %1385 = vmatprep.subr.mxu0 0.0
    %1386 = vmatpush1.msra.mxu0 0.0
    %1387 = vmatprep.subr.mxu0 0.0
    %1388 = vmatpush1.msra.mxu0 0.0
    %1389 = vmatprep.subr.mxu0 0.0
    %1390 = vmatpush1.msra.mxu0 0.0
    %1391 = vmatprep.subr.mxu0 0.0
    %1392 = vmatpush1.msra.mxu0 0.0
    %1393 = vmatprep.subr.mxu0 0.0
    %1394 = vmatpush1.msra.mxu0 0.0
    %1395 = vmatprep.subr.mxu0 0.0
    %1396 = vmatpush1.msra.mxu0 0.0
    %1397 = vmatprep.subr.mxu0 0.0
    %1398 = vmatpush1.msra.mxu0 0.0
    %1399 = vmatprep.subr.mxu0 0.0
    %1400 = vmatpush1.msra.mxu0 0.0
    %1401 = vmatprep.subr.mxu0 0.0
    %1402 = vmatpush1.msra.mxu0 0.0
    %1403 = vmatprep.subr.mxu0 0.0
    %1404 = vmatpush1.msra.mxu0 0.0
    %1405 = vmatprep.subr.mxu0 0.0
    %1406 = vmatpush1.msra.mxu0 0.0
    %1407 = vmatprep.subr.mxu0 0.0
    %1408 = vmatpush1.msra.mxu0 0.0
    %1409 = vmatprep.subr.mxu0 0.0
    %1410 = vmatpush1.msra.mxu0 0.0
    %1411 = vmatprep.subr.mxu0 0.0
    %1412 = vmatpush1.msra.mxu0 0.0
    %1413 = vmatprep.subr.mxu0 0.0
    %1414 = vmatpush1.msra.mxu0 0.0
    %1415 = vmatprep.subr.mxu0 0.0
    %1416 = vmatpush1.msra.mxu0 0.0
    %1417 = vmatprep.subr.mxu0 0.0
    %1418 = vmatpush1.msra.mxu0 0.0
    %1419 = vmatprep.subr.mxu0 0.0
    %1420 = vmatpush1.msra.mxu0 0.0
    %1421 = vmatprep.subr.mxu0 0.0
    %1422 = vmatpush1.msra.mxu0 0.0
    %1423 = vmatprep.subr.mxu0 0.0
    %1424 = vmatpush1.msra.mxu0 0.0
    %1425 = vmatprep.subr.mxu0 0.0
    %1426 = vmatpush1.msra.mxu0 0.0
    %1427 = vmatprep.subr.mxu0 0.0
    %1428 = vmatpush1.msra.mxu0 0.0
    %1429 = vmatprep.mubr.f32.mxu0 0.0
    %1430 = vmatmul.mubr.f32.gmra.mrb[0].mxu0 %v1354
    %v1431 = vpop.f32.mrb[0].mxu0
    %v1432 = vadd.f32 0.0, %v1431
    %v1433 = vpop.f32.mrb[0].mxu0
    %1434 = vmatprep.mubr.f32.mxu0 0.0
    %1435 = vmatmul.mubr.f32.gmra.mrb[0].mxu0 %v1357
    %v1436 = vpop.f32.mrb[0].mxu0
    %v1437 = vadd.f32 0.0, %v1436
    %v1438 = vpop.f32.mrb[0].mxu0
    %1439 = vmatprep.mubr.f32.mxu0 0.0
    %1440 = vmatmul.mubr.f32.gmra.mrb[0].mxu0 %v1360
    %v1441 = vpop.f32.mrb[0].mxu0
    %v1442 = vadd.f32 0.0, %v1441
    %v1443 = vpop.f32.mrb[0].mxu0
    %1444 = vmatprep.mubr.f32.mxu0 0.0
    %1445 = vmatmul.mubr.f32.gmra.mrb[0].mxu0 %v1363
    %v1446 = vpop.f32.mrb[0].mxu0
    %v1447 = vadd.f32 0.0, %v1446
    %v1448 = vpop.f32.mrb[0].mxu0
    %1449 = vdwg.mxu0
    %v1451 = vsel %vm78, %v753, 0
    %v1454 = vsel %vm78, %v758, 0
    %v1457 = vsel %vm78, %v763, 0
    %v1460 = vsel %vm78, %v768, 0
    %1462 = vmatprep.subr.mxu0 0.0
    %1463 = vmatpush1.msra.mxu0 %v76
    %1464 = vmatprep.subr.mxu0 0.0
    %1465 = vmatpush1.msra.mxu0 %v77
    %1466 = vmatprep.subr.mxu0 0.0
    %1467 = vmatpush1.msra.mxu0 0.0
    %1468 = vmatprep.subr.mxu0 0.0
    %1469 = vmatpush1.msra.mxu0 0.0
    %1470 = vmatprep.subr.mxu0 0.0
    %1471 = vmatpush1.msra.mxu0 0.0
    %1472 = vmatprep.subr.mxu0 0.0
    %1473 = vmatpush1.msra.mxu0 0.0
    %1474 = vmatprep.subr.mxu0 0.0
    %1475 = vmatpush1.msra.mxu0 0.0
    %1476 = vmatprep.subr.mxu0 0.0
    %1477 = vmatpush1.msra.mxu0 0.0
    %1478 = vmatprep.subr.mxu0 0.0
    %1479 = vmatpush1.msra.mxu0 0.0
    %1480 = vmatprep.subr.mxu0 0.0
    %1481 = vmatpush1.msra.mxu0 0.0
    %1482 = vmatprep.subr.mxu0 0.0
    %1483 = vmatpush1.msra.mxu0 0.0
    %1484 = vmatprep.subr.mxu0 0.0
    %1485 = vmatpush1.msra.mxu0 0.0
    %1486 = vmatprep.subr.mxu0 0.0
    %1487 = vmatpush1.msra.mxu0 0.0
    %1488 = vmatprep.subr.mxu0 0.0
    %1489 = vmatpush1.msra.mxu0 0.0
    %1490 = vmatprep.subr.mxu0 0.0
    %1491 = vmatpush1.msra.mxu0 0.0
    %1492 = vmatprep.subr.mxu0 0.0
    %1493 = vmatpush1.msra.mxu0 0.0
    %1494 = vmatprep.subr.mxu0 0.0
    %1495 = vmatpush1.msra.mxu0 0.0
    %1496 = vmatprep.subr.mxu0 0.0
    %1497 = vmatpush1.msra.mxu0 0.0
    %1498 = vmatprep.subr.mxu0 0.0
    %1499 = vmatpush1.msra.mxu0 0.0
    %1500 = vmatprep.subr.mxu0 0.0
    %1501 = vmatpush1.msra.mxu0 0.0
    %1502 = vmatprep.subr.mxu0 0.0
    %1503 = vmatpush1.msra.mxu0 0.0
    %1504 = vmatprep.subr.mxu0 0.0
    %1505 = vmatpush1.msra.mxu0 0.0
    %1506 = vmatprep.subr.mxu0 0.0
    %1507 = vmatpush1.msra.mxu0 0.0
    %1508 = vmatprep.subr.mxu0 0.0
    %1509 = vmatpush1.msra.mxu0 0.0
    %1510 = vmatprep.subr.mxu0 0.0
    %1511 = vmatpush1.msra.mxu0 0.0
    %1512 = vmatprep.subr.mxu0 0.0
    %1513 = vmatpush1.msra.mxu0 0.0
    %1514 = vmatprep.subr.mxu0 0.0
    %1515 = vmatpush1.msra.mxu0 0.0
    %1516 = vmatprep.subr.mxu0 0.0
    %1517 = vmatpush1.msra.mxu0 0.0
    %1518 = vmatprep.subr.mxu0 0.0
    %1519 = vmatpush1.msra.mxu0 0.0
    %1520 = vmatprep.subr.mxu0 0.0
    %1521 = vmatpush1.msra.mxu0 0.0
    %1522 = vmatprep.subr.mxu0 0.0
    %1523 = vmatpush1.msra.mxu0 0.0
    %1524 = vmatprep.subr.mxu0 0.0
    %1525 = vmatpush1.msra.mxu0 0.0
    %1526 = vmatprep.mubr.f32.mxu0 0.0
    %1527 = vmatmul.mubr.f32.gmra.mrb[0].mxu0 %v1451
    %v1528 = vpop.f32.mrb[0].mxu0
    %v1529 = vadd.f32 0.0, %v1528
    %v1530 = vpop.f32.mrb[0].mxu0
    %1531 = vmatprep.mubr.f32.mxu0 0.0
    %1532 = vmatmul.mubr.f32.gmra.mrb[0].mxu0 %v1454
    %v1533 = vpop.f32.mrb[0].mxu0
    %v1534 = vadd.f32 0.0, %v1533
    %v1535 = vpop.f32.mrb[0].mxu0
    %1536 = vmatprep.mubr.f32.mxu0 0.0
    %1537 = vmatmul.mubr.f32.gmra.mrb[0].mxu0 %v1457
    %v1538 = vpop.f32.mrb[0].mxu0
    %v1539 = vadd.f32 0.0, %v1538
    %v1540 = vpop.f32.mrb[0].mxu0
    %1541 = vmatprep.mubr.f32.mxu0 0.0
    %1542 = vmatmul.mubr.f32.gmra.mrb[0].mxu0 %v1460
    %v1543 = vpop.f32.mrb[0].mxu0
    %v1544 = vadd.f32 0.0, %v1543
    %v1545 = vpop.f32.mrb[0].mxu0
    %1546 = vdwg.mxu0
    %vm1547 = vcmask 261120
    %1548 = vst.msk [vmem:[#allocation8] sm:$0xff] %vm1547, %v850
    %1549 = vst.msk [vmem:[#allocation8 + $0x8] sm:$0xff] %vm1547, %v855
    %1550 = vst.msk [vmem:[#allocation8 + $0x10] sm:$0xff] %vm1547, %v860
    %1551 = vst.msk [vmem:[#allocation8 + $0x18] sm:$0xff] %vm1547, %v865
    %1552 = vst.msk [vmem:[#allocation8 + $0x20] sm:$0xff] %vm1547, %v947
    %1553 = vst.msk [vmem:[#allocation8 + $0x28] sm:$0xff] %vm1547, %v952
    %1554 = vst.msk [vmem:[#allocation8 + $0x30] sm:$0xff] %vm1547, %v957
    %1555 = vst.msk [vmem:[#allocation8 + $0x38] sm:$0xff] %vm1547, %v962
    %1556 = vst.msk [vmem:[#allocation8 + $0x40] sm:$0xff] %vm1547, %v1044
    %1557 = vst.msk [vmem:[#allocation8 + $0x48] sm:$0xff] %vm1547, %v1049
    %1558 = vst.msk [vmem:[#allocation8 + $0x50] sm:$0xff] %vm1547, %v1054
    %1559 = vst.msk [vmem:[#allocation8 + $0x58] sm:$0xff] %vm1547, %v1059
    %1560 = vst.msk [vmem:[#allocation8 + $0x60] sm:$0xff] %vm1547, %v1141
    %1561 = vst.msk [vmem:[#allocation8 + $0x68] sm:$0xff] %vm1547, %v1146
    %1562 = vst.msk [vmem:[#allocation8 + $0x70] sm:$0xff] %vm1547, %v1151
    %1563 = vst.msk [vmem:[#allocation8 + $0x78] sm:$0xff] %vm1547, %v1156
    %1564 = vst.msk [vmem:[#allocation8 + $0x80] sm:$0xff] %vm1547, %v1238
    %1565 = vst.msk [vmem:[#allocation8 + $0x88] sm:$0xff] %vm1547, %v1243
    %1566 = vst.msk [vmem:[#allocation8 + $0x90] sm:$0xff] %vm1547, %v1248
    %1567 = vst.msk [vmem:[#allocation8 + $0x98] sm:$0xff] %vm1547, %v1253
    %1568 = vst.msk [vmem:[#allocation8 + $0xa0] sm:$0xff] %vm1547, %v1335
    %1569 = vst.msk [vmem:[#allocation8 + $0xa8] sm:$0xff] %vm1547, %v1340
    %1570 = vst.msk [vmem:[#allocation8 + $0xb0] sm:$0xff] %vm1547, %v1345
    %1571 = vst.msk [vmem:[#allocation8 + $0xb8] sm:$0xff] %vm1547, %v1350
    %1572 = vst.msk [vmem:[#allocation8 + $0xc0] sm:$0xff] %vm1547, %v1432
    %1573 = vst.msk [vmem:[#allocation8 + $0xc8] sm:$0xff] %vm1547, %v1437
    %1574 = vst.msk [vmem:[#allocation8 + $0xd0] sm:$0xff] %vm1547, %v1442
    %1575 = vst.msk [vmem:[#allocation8 + $0xd8] sm:$0xff] %vm1547, %v1447
    %1576 = vst.msk [vmem:[#allocation8 + $0xe0] sm:$0xff] %vm1547, %v1529
    %1577 = vst.msk [vmem:[#allocation8 + $0xe8] sm:$0xff] %vm1547, %v1534
    %1578 = vst.msk [vmem:[#allocation8 + $0xf0] sm:$0xff] %vm1547, %v1539
    %1579 = vst.msk [vmem:[#allocation8 + $0xf8] sm:$0xff] %vm1547, %v1544
    // Predicated region
    $region26: #{tpu_custom_call.1} parent=1 // pred_check
      _
    $region27: #{tpu_custom_call.1} parent=1 // pred_check_branch
      %1581 = sbr.rel (0) target = $region29
    $region28: #{tpu_custom_call.1} parent=1 // pred_region
      %s1583 = ssub.s32 4096, 4096
      %1584 = vsyncadd [#allocation4], %s1583
      %s1585 = sshll.u32 [#allocation8], 4
      %s1586 = int_to_ptr.vmem [resolvable:$true] %s1585
      %1591 = dma.vmem_to_hbm [thread:$0]  %s1586, 4096, %s3, [#allocation4], 128, 128, 8
    $region29: #{tpu_custom_call.1} parent=1 // pred_fallthru
      _
    // Predicated region
    $region30: #{tpu_custom_call.1} parent=1 // pred_check
      _
    $region31: #{tpu_custom_call.1} parent=1 // pred_check_branch
      %1593 = sbr.rel (0) target = $region33
    $region32: #{tpu_custom_call.1} parent=1 // pred_region
      %1594 = dma.done [#allocation4], 4096
    $region33: #{tpu_custom_call.1} parent=1 // pred_fallthru
      _
    %1595 = vsyncpa [#allocation3], 1
    %1596 = vsyncpa [#allocation6], 1
    %1597 = vsyncpa [#allocation4], 1

</llo_original>
